<compile_context>
chip_gen: v7x
topology: tpu7x:2x2x1
jax: 0.10.0
libtpu: 0.0.40
codegen_flags: <defaults>
</compile_context>

<pallas_src>
import collections
import functools

import numpy as np
import jax
import jax.numpy as jnp
from jax.experimental import pallas as pl
from jax.experimental.pallas import tpu as pltpu


def _round_up(x, m):
    return (x + m - 1) // m * m


ApplyMeta = collections.namedtuple(
    "ApplyMeta",
    ["d_in", "d_out", "m", "w_off", "out_w",
     "expand_idx", "select_idx", "gather_idx",
     "bias_off", "bias_reg_off", "bias_reg_w"])


# -----------------------------------------------------------------------------
# Parameter construction (per-net, mirrors the PyTorch module) and host packing
# -----------------------------------------------------------------------------
def init_params(key, model_dims, hyper_dims, random_bias=False):
    """Per-hypernet (W, b) lists; W stored pre-transposed as (in, out).

    Net order: for each model layer i -> [weight-hypernet_i, bias-hypernet_i].
    Xavier-uniform weights; the module zero-inits biases, but `random_bias`
    lets the self-test exercise the bias packing numerically.
    """
    n_model = len(model_dims) - 1
    nets = []
    for i in range(n_model):
        for target in (model_dims[i] * model_dims[i + 1], model_dims[i + 1]):
            dims = list(hyper_dims) + [target]
            layers = []
            for j in range(len(dims) - 1):
                fan_in, fan_out = dims[j], dims[j + 1]
                bound = (6.0 / (fan_in + fan_out)) ** 0.5
                key, kw, kb = jax.random.split(key, 3)
                w = jax.random.uniform(kw, (fan_in, fan_out), jnp.float32,
                                       -bound, bound)
                if random_bias:
                    b = jax.random.uniform(kb, (fan_out,), jnp.float32,
                                           -0.1, 0.1)
                else:
                    b = jnp.zeros((fan_out,), jnp.float32)
                layers.append((w, b))
            nets.append(layers)
    return nets


def pack_params(nets, model_dims, hyper_dims, param_dtype=jnp.float32):
    """Pack ALL hypernet layers into one weight buffer + one bias buffer, and
    build the constant 0/1 matrices used in the kernel.

    Generated-output column layout (last fused hypernet layer):
      [ w_seg_0 (pad128) | w_seg_1 (pad128) | ... | bias region (pad128) ]
    with all per-layer biases packed contiguously inside the bias region.
    """
    n_model = len(model_dims) - 1
    n_nets = 2 * n_model
    n_hl = len(hyper_dims)  # linear layers per hypernet

    # ---- generated-parameter column layout ---------------------------------
    w_sizes = [model_dims[i] * model_dims[i + 1] for i in range(n_model)]
    b_sizes = [model_dims[i + 1] for i in range(n_model)]
    w_off, col = [], 0
    for m in w_sizes:
        w_off.append(col)
        col += _round_up(m, 128)
    bias_reg_off = col
    b_off = []
    for d in b_sizes:
        b_off.append(col)
        col += d
    bias_reg_w = _round_up(col - bias_reg_off, 128)
    total_out = bias_reg_off + bias_reg_w

    # ---- fused hypernet layer shapes (one matmul per depth level) ----------
    layer_shapes = []
    for l in range(n_hl):
        in_w = hyper_dims[0] if l == 0 else n_nets * hyper_dims[l]
        out_w = total_out if l == n_hl - 1 else n_nets * hyper_dims[l + 1]
        layer_shapes.append((in_w, out_w))
    max_w = max(ow for _, ow in layer_shapes)
    row_offs, r = [], 0
    for in_w, _ in layer_shapes:
        row_offs.append(r)
        r += _round_up(in_w, 8)

    wbuf = np.zeros((r, max_w), np.float32)
    bbuf = np.zeros((n_hl, max_w), np.float32)

    def last_layer_cols(k):
        i = k // 2
        if k % 2 == 0:
            return w_off[i], w_sizes[i]
        return b_off[i], b_sizes[i]

    for l in range(n_hl):
        r0 = row_offs[l]
        for k in range(n_nets):
            wk, bk = nets[k][l]
            if l == n_hl - 1:
                c0, width = last_layer_cols(k)
            else:
                c0, width = k * hyper_dims[l + 1], hyper_dims[l + 1]
            rr = r0 if l == 0 else r0 + k * hyper_dims[l]
            wbuf[rr:rr + hyper_dims[l], c0:c0 + width] = np.asarray(wk)
            bbuf[l, c0:c0 + width] = np.asarray(bk)

    # ---- hoisted constant 0/1 matrices for the einsum emulation ------------
    consts, apply_meta = [], []
    for i in range(n_model):
        d_in, d_out = model_dims[i], model_dims[i + 1]
        m = w_sizes[i]
        last = (i == n_model - 1)
        out_w = _round_up(d_out, 128) if last else d_out  # lane-dense Q-head

        er = np.arange(d_in)[:, None]
        ec = np.arange(m)[None, :]
        expand = (ec // d_out == er).astype(np.float32)          # (d_in, m)
        sr = np.arange(m)[:, None]
        sc = np.arange(out_w)[None, :]
        select = ((sr % d_out == sc) & (sc < d_out)).astype(np.float32)

        e_idx = len(consts); consts.append(expand)
        s_idx = len(consts); consts.append(select)

        # Final layer (lane-dense bias) or non-128-aligned bias -> gather dot.
        need_gather = last or (b_off[i] % 128 != 0)
        if need_gather:
            g = np.zeros((bias_reg_w, out_w), np.float32)
            rel = b_off[i] - bias_reg_off
            g[rel:rel + d_out, :d_out] = np.eye(d_out, dtype=np.float32)
            g_idx = len(consts); consts.append(g)
        else:
            g_idx = -1

        apply_meta.append(ApplyMeta(d_in, d_out, m, w_off[i], out_w,
                                    e_idx, s_idx, g_idx,
                                    b_off[i], bias_reg_off, bias_reg_w))

    meta = dict(layer_shapes=tuple(layer_shapes),
                row_offs=tuple(row_offs),
                apply_meta=tuple(apply_meta),
                total_out=total_out,
                out_dim=model_dims[-1])
    wbuf_j = jnp.asarray(wbuf, dtype=param_dtype)
    bbuf_j = jnp.asarray(bbuf, dtype=jnp.float32)   # added after f32 accumulation
    consts_j = [jnp.asarray(c, dtype=param_dtype) for c in consts]
    return wbuf_j, bbuf_j, consts_j, meta


# -----------------------------------------------------------------------------
# Pallas kernel
# -----------------------------------------------------------------------------
def _hyper_dqn_kernel(layer_shapes, row_offs, apply_meta, n_consts, *refs):
    x_ref, z_ref, wbuf_ref, bbuf_ref = refs[:4]
    const_refs = refs[4:4 + n_consts]
    out_ref = refs[4 + n_consts]
    pdt = wbuf_ref.dtype                       # f32 or bf16 (f32 accumulation)

    # ---- fused hyper-networks: ONE matmul per depth level for ALL nets -----
    n_hl = len(layer_shapes)
    h = z_ref[...].astype(pdt)
    for l, (in_w, out_w) in enumerate(layer_shapes):
        r0 = row_offs[l]
        w = wbuf_ref[r0:r0 + in_w, 0:out_w]    # sublane/lane aligned slice
        b = bbuf_ref[l:l + 1, 0:out_w]
        a = jnp.dot(h, w, preferred_element_type=jnp.float32) + b
        if l < n_hl - 1:
            h = jnp.maximum(a, 0.0).astype(pdt)
        else:
            h = a                               # (tile_B, total_out), float32
    hp = h.astype(pdt)

    # ---- apply the generated per-sample layers on the MXU -------------------
    # einsum('bj,bjk->bk', x, w_flat.view(B,d_in,d_out)) as two MXU dots against
    # host-precomputed constant 0/1 matrices (no in-kernel iota/compare):
    #   x_exp[b, j*d_out + k] = x[b, j]
    #   y[b, k] = sum_m (x_exp * w_flat)[b, m] * [m % d_out == k]
    xcur = x_ref[...].astype(pdt)
    y = None
    for lm in apply_meta:
        w_flat = hp[:, lm.w_off:lm.w_off + lm.m]                 # lane aligned
        expand = const_refs[lm.expand_idx][...]
        select = const_refs[lm.select_idx][...]
        x_exp = jnp.dot(xcur, expand, preferred_element_type=jnp.float32)
        xw = (x_exp * w_flat.astype(jnp.float32)).astype(pdt)
        y = jnp.dot(xw, select, preferred_element_type=jnp.float32)
        if lm.gather_idx >= 0:
            # Gather the bias out of the shared bias region into a lane-dense,
            # zero-padded vector aligned with y's (padded) output lanes.
            bias = jnp.dot(
                hp[:, lm.bias_reg_off:lm.bias_reg_off + lm.bias_reg_w],
                const_refs[lm.gather_idx][...],
                preferred_element_type=jnp.float32)
        else:
            bias = h[:, lm.bias_off:lm.bias_off + lm.d_out]      # aligned start
        y = jnp.maximum(y + bias, 0.0)   # ReLU on every layer (incl. Q-head)
        xcur = y.astype(pdt)
    out_ref[...] = y.astype(out_ref.dtype)      # lane-dense (tile_B, 128) store


# -----------------------------------------------------------------------------
# Wrapper
# -----------------------------------------------------------------------------
def hyper_dqn_forward(x, z, wbuf, bbuf, consts, meta, *, tile_b=256):
    B, d_in0 = x.shape
    out_dim = meta["out_dim"]
    out_pad = _round_up(out_dim, 128)           # lane-dense output block
    sub = 16 if wbuf.dtype == jnp.bfloat16 else 8

    tile_b = _round_up(min(tile_b, _round_up(B, sub)), sub)
    bp = _round_up(B, tile_b)
    if bp != B:
        x = jnp.pad(x, ((0, bp - B), (0, 0)))
        z = jnp.pad(z, ((0, bp - B), (0, 0)))
    grid = (bp // tile_b,)

    layer_shapes = meta["layer_shapes"]
    apply_meta = meta["apply_meta"]

    # Cost estimate so XLA can schedule surrounding ops around the custom call.
    flops_row = 2 * sum(iw * ow for iw, ow in layer_shapes)
    for lm in apply_meta:
        flops_row += 2 * (lm.d_in * lm.m + lm.m * lm.out_w)
        if lm.gather_idx >= 0:
            flops_row += 2 * lm.bias_reg_w * lm.out_w
    nbytes = lambda a: int(np.prod(a.shape)) * a.dtype.itemsize
    cost = pl.CostEstimate(
        flops=bp * flops_row,
        transcendentals=0,
        bytes_accessed=(nbytes(x) + nbytes(z) + nbytes(wbuf) + nbytes(bbuf)
                        + sum(nbytes(c) for c in consts) + bp * out_pad * 4))

    kernel = functools.partial(_hyper_dqn_kernel, layer_shapes,
                               meta["row_offs"], apply_meta, len(consts))

    # Weights / constants: constant index_map -> DMA'd once, resident in VMEM.
    # x/z/out: batch-tiled, "parallel" (megacore sharding on v7x).
    # VMEM: tile_b=256 uses ~3 MiB; raise vmem_limit_bytes if tile_b is pushed
    # toward v7x's 64 MiB (32 MiB default-scoped) ceiling.
    in_specs = ([pl.BlockSpec((tile_b, d_in0), lambda i: (i, 0)),
                 pl.BlockSpec((tile_b, z.shape[1]), lambda i: (i, 0)),
                 pl.BlockSpec(wbuf.shape, lambda i: (0, 0)),
                 pl.BlockSpec(bbuf.shape, lambda i: (0, 0))]
                + [pl.BlockSpec(c.shape, lambda i: (0, 0)) for c in consts])

    out = pl.pallas_call(
        kernel,
        out_shape=jax.ShapeDtypeStruct((bp, out_pad), jnp.float32),
        grid=grid,
        in_specs=in_specs,
        out_specs=pl.BlockSpec((tile_b, out_pad), lambda i: (i, 0)),
        compiler_params=pltpu.CompilerParams(
            dimension_semantics=("parallel",)),
        cost_estimate=cost,
    )(x, z, wbuf, bbuf, *consts)
    return out[:B, :out_dim]


# -----------------------------------------------------------------------------
# Pure-JAX reference (mirrors the PyTorch forward, uses the UNPACKED params)
# -----------------------------------------------------------------------------
def hyper_dqn_ref(x, z, nets, model_dims, hyper_dims):
    n_hl = len(hyper_dims)

    def mlp(h, layers):
        for j, (w, b) in enumerate(layers):
            h = h @ w + b
            if j < n_hl - 1:
                h = jnp.maximum(h, 0.0)
        return h

    for i in range(len(model_dims) - 1):
        d_in, d_out = model_dims[i], model_dims[i + 1]
        w_flat = mlp(z, nets[2 * i])
        bias = mlp(z, nets[2 * i + 1])
        w3 = w_flat.reshape(-1, d_in, d_out)
        x = jnp.maximum(jnp.einsum('bj,bjk->bk', x, w3) + bias, 0.0)
    return x


if __name__ == "__main__":
    # Small shapes consistent with the module:
    #   z_dim = hyper_dims[0] = 8, hypernet hidden = 32,
    #   generated (model) net: 16 -> 32 -> 8.
    hyper_dims = [8, 32]
    model_dims = [16, 32, 8]
    B = 2                      # deliberately NOT a multiple of 8 (tests padding)

    key = jax.random.PRNGKey(0)
    kx, kz, kp = jax.random.split(key, 3)
    x = jax.random.normal(kx, (B, model_dims[0]), jnp.float32)
    z = jax.random.normal(kz, (B, hyper_dims[0]), jnp.float32)

    # Random (non-zero) hypernet biases so the bias-packing offsets are actually
    # exercised numerically (the module zero-inits them; forward is identical).
    nets = init_params(kp, model_dims, hyper_dims, random_bias=True)
    ref = hyper_dqn_ref(x, z, nets, model_dims, hyper_dims)

    # float32 path (default)
    wbuf, bbuf, consts, meta = pack_params(nets, model_dims, hyper_dims)
    out = jax.block_until_ready(hyper_dqn_forward(x, z, wbuf, bbuf, consts, meta))
    assert out.shape == (B, model_dims[-1])
    assert jnp.allclose(out, ref, atol=1e-4, rtol=1e-4), "f32 kernel mismatch"

    # Optional bf16-parameter path (v7x lever: 2x MXU rate, half the wbuf DMA);
    # f32 accumulation is kept, so validate with a loose tolerance.
    wbuf16, bbuf16, consts16, meta16 = pack_params(
        nets, model_dims, hyper_dims, param_dtype=jnp.bfloat16)
    out16 = jax.block_until_ready(
        hyper_dqn_forward(x, z, wbuf16, bbuf16, consts16, meta16))
    assert out16.shape == (B, model_dims[-1])
    assert bool(jnp.all(jnp.isfinite(out16)))
    assert jnp.allclose(out16, ref, atol=0.1, rtol=0.1), "bf16 kernel mismatch"

    print("KERNEL_OK")
</pallas_src>

<mosaic_0001>
module attributes {stable_mosaic.version = 11 : i64} {
  func.func @_hyper_dqn_kernel(%arg0: i32, %arg1: memref<8x16xf32, #tpu.memory_space<vmem>>, %arg2: memref<8x8xf32, #tpu.memory_space<vmem>>, %arg3: memref<136x896xf32, #tpu.memory_space<vmem>>, %arg4: memref<2x896xf32, #tpu.memory_space<vmem>>, %arg5: memref<16x512xf32, #tpu.memory_space<vmem>>, %arg6: memref<512x32xf32, #tpu.memory_space<vmem>>, %arg7: memref<32x256xf32, #tpu.memory_space<vmem>>, %arg8: memref<256x128xf32, #tpu.memory_space<vmem>>, %arg9: memref<128x128xf32, #tpu.memory_space<vmem>>, %arg10: memref<8x128xf32, #tpu.memory_space<vmem>>) attributes {dimension_semantics = [#tpu.dimension_semantics<parallel>], iteration_bounds = array<i64: 1>, scalar_prefetch = 0 : i64, scratch_operands = 0 : i64, tpu.core_type = #tpu.core_type<tc>, window_params = [{transform_indices = @transform_0, window_bounds = array<i64: 8, 16>}, {transform_indices = @transform_1, window_bounds = array<i64: 8, 8>}, {pipeline_mode = #tpu.pipeline_mode<synchronous>, transform_indices = @transform_2, window_bounds = array<i64: 136, 896>}, {pipeline_mode = #tpu.pipeline_mode<synchronous>, transform_indices = @transform_3, window_bounds = array<i64: 2, 896>}, {pipeline_mode = #tpu.pipeline_mode<synchronous>, transform_indices = @transform_4, window_bounds = array<i64: 16, 512>}, {pipeline_mode = #tpu.pipeline_mode<synchronous>, transform_indices = @transform_5, window_bounds = array<i64: 512, 32>}, {pipeline_mode = #tpu.pipeline_mode<synchronous>, transform_indices = @transform_6, window_bounds = array<i64: 32, 256>}, {pipeline_mode = #tpu.pipeline_mode<synchronous>, transform_indices = @transform_7, window_bounds = array<i64: 256, 128>}, {pipeline_mode = #tpu.pipeline_mode<synchronous>, transform_indices = @transform_8, window_bounds = array<i64: 128, 128>}, {transform_indices = @transform_9, window_bounds = array<i64: 8, 128>}]} {
    %c0 = arith.constant 0 : index
    %c0_0 = arith.constant 0 : index
    %0 = vector.load %arg2[%c0, %c0_0] : memref<8x8xf32, #tpu.memory_space<vmem>>, vector<8x8xf32>
    %c0_1 = arith.constant 0 : index
    %c0_2 = arith.constant 0 : index
    %1 = vector.load %arg3[%c0_1, %c0_2] : memref<136x896xf32, #tpu.memory_space<vmem>>, vector<8x128xf32>
    %c0_3 = arith.constant 0 : index
    %c0_4 = arith.constant 0 : index
    %2 = vector.load %arg4[%c0_3, %c0_4] : memref<2x896xf32, #tpu.memory_space<vmem>>, vector<1x128xf32>
    %cst = arith.constant dense<0.000000e+00> : vector<8x128xf32>
    %3 = tpu.matmul %0, %1, %cst {dimension_numbers = #tpu.dot_dimension_numbers<[1], [0], [0], [1], [0, 0, 1, 1], [], []>} : vector<8x8xf32>, vector<8x128xf32>, vector<8x128xf32> -> vector<8x128xf32>
    %4 = vector.broadcast %2 : vector<1x128xf32> to vector<8x128xf32>
    %5 = arith.addf %3, %4 : vector<8x128xf32>
    %cst_5 = arith.constant 0.000000e+00 : f32
    %6 = vector.broadcast %cst_5 : f32 to vector<8x128xf32>
    %7 = arith.maximumf %5, %6 : vector<8x128xf32>
    %c8 = arith.constant 8 : index
    %c0_6 = arith.constant 0 : index
    %8 = vector.load %arg3[%c8, %c0_6] : memref<136x896xf32, #tpu.memory_space<vmem>>, vector<128x896xf32>
    %c1 = arith.constant 1 : index
    %c0_7 = arith.constant 0 : index
    %9 = vector.load %arg4[%c1, %c0_7] : memref<2x896xf32, #tpu.memory_space<vmem>>, vector<1x896xf32>
    %cst_8 = arith.constant dense<0.000000e+00> : vector<8x896xf32>
    %10 = tpu.matmul %7, %8, %cst_8 {dimension_numbers = #tpu.dot_dimension_numbers<[1], [0], [0], [1], [0, 0, 1, 1], [], []>} : vector<8x128xf32>, vector<128x896xf32>, vector<8x896xf32> -> vector<8x896xf32>
    %11 = vector.broadcast %9 : vector<1x896xf32> to vector<8x896xf32>
    %12 = arith.addf %10, %11 : vector<8x896xf32>
    %c0_9 = arith.constant 0 : index
    %c0_10 = arith.constant 0 : index
    %13 = vector.load %arg1[%c0_9, %c0_10] : memref<8x16xf32, #tpu.memory_space<vmem>>, vector<8x16xf32>
    %14 = vector.extract_strided_slice %12 {offsets = [0, 0], sizes = [8, 512], strides = [1, 1]} : vector<8x896xf32> to vector<8x512xf32>
    %c0_11 = arith.constant 0 : index
    %c0_12 = arith.constant 0 : index
    %15 = vector.load %arg5[%c0_11, %c0_12] : memref<16x512xf32, #tpu.memory_space<vmem>>, vector<16x512xf32>
    %c0_13 = arith.constant 0 : index
    %c0_14 = arith.constant 0 : index
    %16 = vector.load %arg6[%c0_13, %c0_14] : memref<512x32xf32, #tpu.memory_space<vmem>>, vector<512x32xf32>
    %cst_15 = arith.constant dense<0.000000e+00> : vector<8x512xf32>
    %17 = tpu.matmul %13, %15, %cst_15 {dimension_numbers = #tpu.dot_dimension_numbers<[1], [0], [0], [1], [0, 0, 1, 1], [], []>} : vector<8x16xf32>, vector<16x512xf32>, vector<8x512xf32> -> vector<8x512xf32>
    %18 = arith.mulf %17, %14 : vector<8x512xf32>
    %cst_16 = arith.constant dense<0.000000e+00> : vector<8x32xf32>
    %19 = tpu.matmul %18, %16, %cst_16 {dimension_numbers = #tpu.dot_dimension_numbers<[1], [0], [0], [1], [0, 0, 1, 1], [], []>} : vector<8x512xf32>, vector<512x32xf32>, vector<8x32xf32> -> vector<8x32xf32>
    %20 = vector.extract_strided_slice %12 {offsets = [0, 768], sizes = [8, 32], strides = [1, 1]} : vector<8x896xf32> to vector<8x32xf32>
    %21 = arith.addf %19, %20 : vector<8x32xf32>
    %cst_17 = arith.constant 0.000000e+00 : f32
    %22 = vector.broadcast %cst_17 : f32 to vector<8x32xf32>
    %23 = arith.maximumf %21, %22 : vector<8x32xf32>
    %24 = vector.extract_strided_slice %12 {offsets = [0, 512], sizes = [8, 256], strides = [1, 1]} : vector<8x896xf32> to vector<8x256xf32>
    %c0_18 = arith.constant 0 : index
    %c0_19 = arith.constant 0 : index
    %25 = vector.load %arg7[%c0_18, %c0_19] : memref<32x256xf32, #tpu.memory_space<vmem>>, vector<32x256xf32>
    %c0_20 = arith.constant 0 : index
    %c0_21 = arith.constant 0 : index
    %26 = vector.load %arg8[%c0_20, %c0_21] : memref<256x128xf32, #tpu.memory_space<vmem>>, vector<256x128xf32>
    %cst_22 = arith.constant dense<0.000000e+00> : vector<8x256xf32>
    %27 = tpu.matmul %23, %25, %cst_22 {dimension_numbers = #tpu.dot_dimension_numbers<[1], [0], [0], [1], [0, 0, 1, 1], [], []>} : vector<8x32xf32>, vector<32x256xf32>, vector<8x256xf32> -> vector<8x256xf32>
    %28 = arith.mulf %27, %24 : vector<8x256xf32>
    %cst_23 = arith.constant dense<0.000000e+00> : vector<8x128xf32>
    %29 = tpu.matmul %28, %26, %cst_23 {dimension_numbers = #tpu.dot_dimension_numbers<[1], [0], [0], [1], [0, 0, 1, 1], [], []>} : vector<8x256xf32>, vector<256x128xf32>, vector<8x128xf32> -> vector<8x128xf32>
    %30 = vector.extract_strided_slice %12 {offsets = [0, 768], sizes = [8, 128], strides = [1, 1]} : vector<8x896xf32> to vector<8x128xf32>
    %c0_24 = arith.constant 0 : index
    %c0_25 = arith.constant 0 : index
    %31 = vector.load %arg9[%c0_24, %c0_25] : memref<128x128xf32, #tpu.memory_space<vmem>>, vector<128x128xf32>
    %cst_26 = arith.constant dense<0.000000e+00> : vector<8x128xf32>
    %32 = tpu.matmul %30, %31, %cst_26 {dimension_numbers = #tpu.dot_dimension_numbers<[1], [0], [0], [1], [0, 0, 1, 1], [], []>} : vector<8x128xf32>, vector<128x128xf32>, vector<8x128xf32> -> vector<8x128xf32>
    %33 = arith.addf %29, %32 : vector<8x128xf32>
    %cst_27 = arith.constant 0.000000e+00 : f32
    %34 = vector.broadcast %cst_27 : f32 to vector<8x128xf32>
    %35 = arith.maximumf %33, %34 : vector<8x128xf32>
    %c0_28 = arith.constant 0 : index
    %c0_29 = arith.constant 0 : index
    %36 = vector.load %arg10[%c0_28, %c0_29] : memref<8x128xf32, #tpu.memory_space<vmem>>, vector<8x128xf32>
    tpu.vector_store %arg10[%c0_28, %c0_29], %35 {strides = array<i32>} : memref<8x128xf32, #tpu.memory_space<vmem>>, vector<8x128xf32>,
    return
  }
  func.func @transform_0(%arg0: i32) -> (i32, i32) {
    %c0_i32 = arith.constant 0 : i32
    %c0_i32_0 = arith.constant 0 : i32
    return %arg0, %c0_i32 : i32, i32
  }
  func.func @transform_1(%arg0: i32) -> (i32, i32) {
    %c0_i32 = arith.constant 0 : i32
    %c0_i32_0 = arith.constant 0 : i32
    return %arg0, %c0_i32 : i32, i32
  }
  func.func @transform_2(%arg0: i32) -> (i32, i32) {
    %c0_i32 = arith.constant 0 : i32
    %c0_i32_0 = arith.constant 0 : i32
    %c0_i32_1 = arith.constant 0 : i32
    return %c0_i32, %c0_i32_0 : i32, i32
  }
  func.func @transform_3(%arg0: i32) -> (i32, i32) {
    %c0_i32 = arith.constant 0 : i32
    %c0_i32_0 = arith.constant 0 : i32
    %c0_i32_1 = arith.constant 0 : i32
    return %c0_i32, %c0_i32_0 : i32, i32
  }
  func.func @transform_4(%arg0: i32) -> (i32, i32) {
    %c0_i32 = arith.constant 0 : i32
    %c0_i32_0 = arith.constant 0 : i32
    %c0_i32_1 = arith.constant 0 : i32
    return %c0_i32, %c0_i32_0 : i32, i32
  }
  func.func @transform_5(%arg0: i32) -> (i32, i32) {
    %c0_i32 = arith.constant 0 : i32
    %c0_i32_0 = arith.constant 0 : i32
    %c0_i32_1 = arith.constant 0 : i32
    return %c0_i32, %c0_i32_0 : i32, i32
  }
  func.func @transform_6(%arg0: i32) -> (i32, i32) {
    %c0_i32 = arith.constant 0 : i32
    %c0_i32_0 = arith.constant 0 : i32
    %c0_i32_1 = arith.constant 0 : i32
    return %c0_i32, %c0_i32_0 : i32, i32
  }
  func.func @transform_7(%arg0: i32) -> (i32, i32) {
    %c0_i32 = arith.constant 0 : i32
    %c0_i32_0 = arith.constant 0 : i32
    %c0_i32_1 = arith.constant 0 : i32
    return %c0_i32, %c0_i32_0 : i32, i32
  }
  func.func @transform_8(%arg0: i32) -> (i32, i32) {
    %c0_i32 = arith.constant 0 : i32
    %c0_i32_0 = arith.constant 0 : i32
    %c0_i32_1 = arith.constant 0 : i32
    return %c0_i32, %c0_i32_0 : i32, i32
  }
  func.func @transform_9(%arg0: i32) -> (i32, i32) {
    %c0_i32 = arith.constant 0 : i32
    %c0_i32_0 = arith.constant 0 : i32
    return %arg0, %c0_i32 : i32, i32
  }
}

</mosaic_0001>

<llo_original>
// kernel: tpu_custom_call.1
$region0: #{tpu_custom_call.1}
  #allocation0 [shape = 'u32[]', space=smem, size = 0x4, offset = 0x4, fixed_abs, tag = 'smem constant byte address 0x4 - core index']
  #allocation1 [shape = 'u32[144,128]{1,0:T(1,128)}', space=vmem, size = 0x12000, scoped, tag = 'internal scratch']
  %s0 = inlined_call_operand.vmem [shape: f32[8,16], index: 0, kind: input, shape index: {}]
  %s1 = inlined_call_operand.vmem [shape: f32[8,8], index: 1, kind: input, shape index: {}]
  %s2 = inlined_call_operand.hbm [shape: f32[136,896], index: 2, kind: input, shape index: {}]
  %s3 = inlined_call_operand.vmem [shape: f32[2,896], index: 3, kind: input, shape index: {}]
  %s4 = inlined_call_operand.vmem [shape: f32[16,512], index: 4, kind: input, shape index: {}]
  %s5 = inlined_call_operand.vmem [shape: f32[512,32], index: 5, kind: input, shape index: {}]
  %s6 = inlined_call_operand.vmem [shape: f32[32,256], index: 6, kind: input, shape index: {}]
  %s7 = inlined_call_operand.vmem [shape: f32[256,128], index: 7, kind: input, shape index: {}]
  %s8 = inlined_call_operand.vmem [shape: f32[128,128], index: 8, kind: input, shape index: {}]
  %s9 = inlined_call_operand.hbm [shape: f32[8,128], index: 9, kind: output, shape index: {}]
  %s10 = sld [smem:[#allocation0]]
  $region50: #{tpu_custom_call.1} parent=0
    _
  %s12 = ssub.s32 1, %s10
  %s13 = scalar_select 0, %s12, %s10
  $region1: #{tpu_custom_call.1} parent=0
    #allocation2 [shape = 'u8[487424]{0}', space=vmem, size = 0x77000, scoped, tag = 'input window, operand 2, single buffered']
    #allocation3 [shape = 's32[1]{0}', space=sflag, size = 0x4, scoped, tag = 'scoped memory for tpu_custom_call.1']
    #allocation4 [shape = 's32[1]{0}', space=sflag, size = 0x4, scoped, tag = 'scoped memory for tpu_custom_call.1']
    #allocation5 [shape = 'u8[4096]{0}', space=vmem, size = 0x1000, scoped, tag = 'output window, operand 0, single buffered']
    %14 = vsyncpa [#allocation3], 0
    %15 = vsyncpa [#allocation4], 0
    // Predicated region
    $region2: #{tpu_custom_call.1} parent=1 // pred_check
      _
    $region3: #{tpu_custom_call.1} parent=1 // pred_check_branch
      %17 = sbr.rel (0) target = $region5
    $region4: #{tpu_custom_call.1} parent=1 // pred_region
      _
    $region5: #{tpu_custom_call.1} parent=1 // pred_fallthru
      _
    // Predicated region
    $region6: #{tpu_custom_call.1} parent=1 // pred_check
      _
    $region7: #{tpu_custom_call.1} parent=1 // pred_check_branch
      %19 = sbr.rel (0) target = $region9
    $region8: #{tpu_custom_call.1} parent=1 // pred_region
      _
    $region9: #{tpu_custom_call.1} parent=1 // pred_fallthru
      _
    // Predicated region
    $region10: #{tpu_custom_call.1} parent=1 // pred_check
      _
    $region11: #{tpu_custom_call.1} parent=1 // pred_check_branch
      %21 = sbr.rel (0) target = $region13
    $region12: #{tpu_custom_call.1} parent=1 // pred_region
      %s23 = ssub.s32 15232, 15232
      %24 = vsyncadd [#allocation3], %s23
      %s25 = sshll.u32 [#allocation2], 4
      %s26 = int_to_ptr.vmem [resolvable:$true] %s25
      %31 = dma.hbm_to_vmem [thread:$0]  %s2, 15232, %s26, [#allocation3], 896, 896, 56
    $region13: #{tpu_custom_call.1} parent=1 // pred_fallthru
      _
    // Predicated region
    $region14: #{tpu_custom_call.1} parent=1 // pred_check
      _
    $region15: #{tpu_custom_call.1} parent=1 // pred_check_branch
      %33 = sbr.rel (0) target = $region17
    $region16: #{tpu_custom_call.1} parent=1 // pred_region
      _
    $region17: #{tpu_custom_call.1} parent=1 // pred_fallthru
      _
    // Predicated region
    $region18: #{tpu_custom_call.1} parent=1 // pred_check
      _
    $region19: #{tpu_custom_call.1} parent=1 // pred_check_branch
      %35 = sbr.rel (0) target = $region21
    $region20: #{tpu_custom_call.1} parent=1 // pred_region
      _
    $region21: #{tpu_custom_call.1} parent=1 // pred_fallthru
      _
    // Predicated region
    $region22: #{tpu_custom_call.1} parent=1 // pred_check
      _
    $region23: #{tpu_custom_call.1} parent=1 // pred_check_branch
      %37 = sbr.rel (0) target = $region25
    $region24: #{tpu_custom_call.1} parent=1 // pred_region
      _
    $region25: #{tpu_custom_call.1} parent=1 // pred_fallthru
      _
    // Predicated region
    $region26: #{tpu_custom_call.1} parent=1 // pred_check
      _
    $region27: #{tpu_custom_call.1} parent=1 // pred_check_branch
      %39 = sbr.rel (0) target = $region29
    $region28: #{tpu_custom_call.1} parent=1 // pred_region
      _
    $region29: #{tpu_custom_call.1} parent=1 // pred_fallthru
      _
    // Predicated region
    $region30: #{tpu_custom_call.1} parent=1 // pred_check
      _
    $region31: #{tpu_custom_call.1} parent=1 // pred_check_branch
      %41 = sbr.rel (0) target = $region33
    $region32: #{tpu_custom_call.1} parent=1 // pred_region
      _
    $region33: #{tpu_custom_call.1} parent=1 // pred_fallthru
      _
    // Predicated region
    $region34: #{tpu_custom_call.1} parent=1 // pred_check
      _
    $region35: #{tpu_custom_call.1} parent=1 // pred_check_branch
      %43 = sbr.rel (0) target = $region37
    $region36: #{tpu_custom_call.1} parent=1 // pred_region
      _
    $region37: #{tpu_custom_call.1} parent=1 // pred_fallthru
      _
    // Predicated region
    $region38: #{tpu_custom_call.1} parent=1 // pred_check
      _
    $region39: #{tpu_custom_call.1} parent=1 // pred_check_branch
      %45 = sbr.rel (0) target = $region41
    $region40: #{tpu_custom_call.1} parent=1 // pred_region
      %46 = dma.done [#allocation3], 15232
    $region41: #{tpu_custom_call.1} parent=1 // pred_fallthru
      _
    %v47 = vld [vmem:[%s1] sm:$0xff]
    %v48 = vld [vmem:[#allocation2] sm:$0xff]
    %v49 = vld [vmem:[%s3] sm:$0x1]
    %v50 = vlaneseq
    %v51 = vshrl.u32 %v50, 7
    %v52 = vsub.s32 0, %v51
    %v53 = vrot.slane %v49, %v52
    %vm54 = vcmask 64512
    %v56 = vsel %vm54, %v47, 0
    %58 = vmatprep.subr.mxu0 0.0
    %59 = vmatpush1.msra.mxu0 %v48
    %60 = vmatprep.subr.mxu0 0.0
    %61 = vmatpush1.msra.mxu0 0.0
    %62 = vmatprep.subr.mxu0 0.0
    %63 = vmatpush1.msra.mxu0 0.0
    %64 = vmatprep.subr.mxu0 0.0
    %65 = vmatpush1.msra.mxu0 0.0
    %66 = vmatprep.subr.mxu0 0.0
    %67 = vmatpush1.msra.mxu0 0.0
    %68 = vmatprep.subr.mxu0 0.0
    %69 = vmatpush1.msra.mxu0 0.0
    %70 = vmatprep.subr.mxu0 0.0
    %71 = vmatpush1.msra.mxu0 0.0
    %72 = vmatprep.subr.mxu0 0.0
    %73 = vmatpush1.msra.mxu0 0.0
    %74 = vmatprep.subr.mxu0 0.0
    %75 = vmatpush1.msra.mxu0 0.0
    %76 = vmatprep.subr.mxu0 0.0
    %77 = vmatpush1.msra.mxu0 0.0
    %78 = vmatprep.subr.mxu0 0.0
    %79 = vmatpush1.msra.mxu0 0.0
    %80 = vmatprep.subr.mxu0 0.0
    %81 = vmatpush1.msra.mxu0 0.0
    %82 = vmatprep.subr.mxu0 0.0
    %83 = vmatpush1.msra.mxu0 0.0
    %84 = vmatprep.subr.mxu0 0.0
    %85 = vmatpush1.msra.mxu0 0.0
    %86 = vmatprep.subr.mxu0 0.0
    %87 = vmatpush1.msra.mxu0 0.0
    %88 = vmatprep.subr.mxu0 0.0
    %89 = vmatpush1.msra.mxu0 0.0
    %90 = vmatprep.subr.mxu0 0.0
    %91 = vmatpush1.msra.mxu0 0.0
    %92 = vmatprep.subr.mxu0 0.0
    %93 = vmatpush1.msra.mxu0 0.0
    %94 = vmatprep.subr.mxu0 0.0
    %95 = vmatpush1.msra.mxu0 0.0
    %96 = vmatprep.subr.mxu0 0.0
    %97 = vmatpush1.msra.mxu0 0.0
    %98 = vmatprep.subr.mxu0 0.0
    %99 = vmatpush1.msra.mxu0 0.0
    %100 = vmatprep.subr.mxu0 0.0
    %101 = vmatpush1.msra.mxu0 0.0
    %102 = vmatprep.subr.mxu0 0.0
    %103 = vmatpush1.msra.mxu0 0.0
    %104 = vmatprep.subr.mxu0 0.0
    %105 = vmatpush1.msra.mxu0 0.0
    %106 = vmatprep.subr.mxu0 0.0
    %107 = vmatpush1.msra.mxu0 0.0
    %108 = vmatprep.subr.mxu0 0.0
    %109 = vmatpush1.msra.mxu0 0.0
    %110 = vmatprep.subr.mxu0 0.0
    %111 = vmatpush1.msra.mxu0 0.0
    %112 = vmatprep.subr.mxu0 0.0
    %113 = vmatpush1.msra.mxu0 0.0
    %114 = vmatprep.subr.mxu0 0.0
    %115 = vmatpush1.msra.mxu0 0.0
    %116 = vmatprep.subr.mxu0 0.0
    %117 = vmatpush1.msra.mxu0 0.0
    %118 = vmatprep.subr.mxu0 0.0
    %119 = vmatpush1.msra.mxu0 0.0
    %120 = vmatprep.subr.mxu0 0.0
    %121 = vmatpush1.msra.mxu0 0.0
    %122 = vmatprep.mubr.f32.mxu0 0.0
    %123 = vmatmul.mubr.f32.gmra.mrb[0].mxu0 %v56
    %v124 = vpop.f32.mrb[0].mxu0
    %v125 = vadd.f32 %v53, %v124
    %v126 = vpop.f32.mrb[0].mxu0
    %127 = vdwg.mxu0
    %v128 = vmax.f32 %v125, 0.0
    %v129 = vld [vmem:[#allocation2 + $0x38] sm:$0xff]
    %v130 = vld [vmem:[#allocation2 + $0x40] sm:$0xff]
    %v131 = vld [vmem:[#allocation2 + $0x48] sm:$0xff]
    %v132 = vld [vmem:[#allocation2 + $0x50] sm:$0xff]
    %v133 = vld [vmem:[#allocation2 + $0x58] sm:$0xff]
    %v134 = vld [vmem:[#allocation2 + $0x60] sm:$0xff]
    %v135 = vld [vmem:[#allocation2 + $0x68] sm:$0xff]
    %v136 = vld [vmem:[#allocation2 + $0x70] sm:$0xff]
    %v137 = vld [vmem:[#allocation2 + $0x78] sm:$0xff]
    %v138 = vld [vmem:[#allocation2 + $0x80] sm:$0xff]
    %v139 = vld [vmem:[#allocation2 + $0x88] sm:$0xff]
    %v140 = vld [vmem:[#allocation2 + $0x90] sm:$0xff]
    %v141 = vld [vmem:[#allocation2 + $0x98] sm:$0xff]
    %v142 = vld [vmem:[#allocation2 + $0xa0] sm:$0xff]
    %v143 = vld [vmem:[#allocation2 + $0xa8] sm:$0xff]
    %v144 = vld [vmem:[#allocation2 + $0xb0] sm:$0xff]
    %v145 = vld [vmem:[#allocation2 + $0xb8] sm:$0xff]
    %v146 = vld [vmem:[#allocation2 + $0xc0] sm:$0xff]
    %v147 = vld [vmem:[#allocation2 + $0xc8] sm:$0xff]
    %v148 = vld [vmem:[#allocation2 + $0xd0] sm:$0xff]
    %v149 = vld [vmem:[#allocation2 + $0xd8] sm:$0xff]
    %v150 = vld [vmem:[#allocation2 + $0xe0] sm:$0xff]
    %v151 = vld [vmem:[#allocation2 + $0xe8] sm:$0xff]
    %v152 = vld [vmem:[#allocation2 + $0xf0] sm:$0xff]
    %v153 = vld [vmem:[#allocation2 + $0xf8] sm:$0xff]
    %v154 = vld [vmem:[#allocation2 + $0x100] sm:$0xff]
    %v155 = vld [vmem:[#allocation2 + $0x108] sm:$0xff]
    %v156 = vld [vmem:[#allocation2 + $0x110] sm:$0xff]
    %v157 = vld [vmem:[#allocation2 + $0x118] sm:$0xff]
    %v158 = vld [vmem:[#allocation2 + $0x120] sm:$0xff]
    %v159 = vld [vmem:[#allocation2 + $0x128] sm:$0xff]
    %v160 = vld [vmem:[#allocation2 + $0x130] sm:$0xff]
    %v161 = vld [vmem:[#allocation2 + $0x138] sm:$0xff]
    %v162 = vld [vmem:[#allocation2 + $0x140] sm:$0xff]
    %v163 = vld [vmem:[#allocation2 + $0x148] sm:$0xff]
    %v164 = vld [vmem:[#allocation2 + $0x150] sm:$0xff]
    %v165 = vld [vmem:[#allocation2 + $0x158] sm:$0xff]
    %v166 = vld [vmem:[#allocation2 + $0x160] sm:$0xff]
    %v167 = vld [vmem:[#allocation2 + $0x168] sm:$0xff]
    %v168 = vld [vmem:[#allocation2 + $0x170] sm:$0xff]
    %v169 = vld [vmem:[#allocation2 + $0x178] sm:$0xff]
    %v170 = vld [vmem:[#allocation2 + $0x180] sm:$0xff]
    %v171 = vld [vmem:[#allocation2 + $0x188] sm:$0xff]
    %v172 = vld [vmem:[#allocation2 + $0x190] sm:$0xff]
    %v173 = vld [vmem:[#allocation2 + $0x198] sm:$0xff]
    %v174 = vld [vmem:[#allocation2 + $0x1a0] sm:$0xff]
    %v175 = vld [vmem:[#allocation2 + $0x1a8] sm:$0xff]
    %v176 = vld [vmem:[#allocation2 + $0x1b0] sm:$0xff]
    %v177 = vld [vmem:[#allocation2 + $0x1b8] sm:$0xff]
    %v178 = vld [vmem:[#allocation2 + $0x1c0] sm:$0xff]
    %v179 = vld [vmem:[#allocation2 + $0x1c8] sm:$0xff]
    %v180 = vld [vmem:[#allocation2 + $0x1d0] sm:$0xff]
    %v181 = vld [vmem:[#allocation2 + $0x1d8] sm:$0xff]
    %v182 = vld [vmem:[#allocation2 + $0x1e0] sm:$0xff]
    %v183 = vld [vmem:[#allocation2 + $0x1e8] sm:$0xff]
    %v184 = vld [vmem:[#allocation2 + $0x1f0] sm:$0xff]
    %v185 = vld [vmem:[#allocation2 + $0x1f8] sm:$0xff]
    %v186 = vld [vmem:[#allocation2 + $0x200] sm:$0xff]
    %v187 = vld [vmem:[#allocation2 + $0x208] sm:$0xff]
    %v188 = vld [vmem:[#allocation2 + $0x210] sm:$0xff]
    %v189 = vld [vmem:[#allocation2 + $0x218] sm:$0xff]
    %v190 = vld [vmem:[#allocation2 + $0x220] sm:$0xff]
    %v191 = vld [vmem:[#allocation2 + $0x228] sm:$0xff]
    %v192 = vld [vmem:[#allocation2 + $0x230] sm:$0xff]
    %v193 = vld [vmem:[#allocation2 + $0x238] sm:$0xff]
    %v194 = vld [vmem:[#allocation2 + $0x240] sm:$0xff]
    %v195 = vld [vmem:[#allocation2 + $0x248] sm:$0xff]
    %v196 = vld [vmem:[#allocation2 + $0x250] sm:$0xff]
    %v197 = vld [vmem:[#allocation2 + $0x258] sm:$0xff]
    %v198 = vld [vmem:[#allocation2 + $0x260] sm:$0xff]
    %v199 = vld [vmem:[#allocation2 + $0x268] sm:$0xff]
    %v200 = vld [vmem:[#allocation2 + $0x270] sm:$0xff]
    %v201 = vld [vmem:[#allocation2 + $0x278] sm:$0xff]
    %v202 = vld [vmem:[#allocation2 + $0x280] sm:$0xff]
    %v203 = vld [vmem:[#allocation2 + $0x288] sm:$0xff]
    %v204 = vld [vmem:[#allocation2 + $0x290] sm:$0xff]
    %v205 = vld [vmem:[#allocation2 + $0x298] sm:$0xff]
    %v206 = vld [vmem:[#allocation2 + $0x2a0] sm:$0xff]
    %v207 = vld [vmem:[#allocation2 + $0x2a8] sm:$0xff]
    %v208 = vld [vmem:[#allocation2 + $0x2b0] sm:$0xff]
    %v209 = vld [vmem:[#allocation2 + $0x2b8] sm:$0xff]
    %v210 = vld [vmem:[#allocation2 + $0x2c0] sm:$0xff]
    %v211 = vld [vmem:[#allocation2 + $0x2c8] sm:$0xff]
    %v212 = vld [vmem:[#allocation2 + $0x2d0] sm:$0xff]
    %v213 = vld [vmem:[#allocation2 + $0x2d8] sm:$0xff]
    %v214 = vld [vmem:[#allocation2 + $0x2e0] sm:$0xff]
    %v215 = vld [vmem:[#allocation2 + $0x2e8] sm:$0xff]
    %v216 = vld [vmem:[#allocation2 + $0x2f0] sm:$0xff]
    %v217 = vld [vmem:[#allocation2 + $0x2f8] sm:$0xff]
    %v218 = vld [vmem:[#allocation2 + $0x300] sm:$0xff]
    %v219 = vld [vmem:[#allocation2 + $0x308] sm:$0xff]
    %v220 = vld [vmem:[#allocation2 + $0x310] sm:$0xff]
    %v221 = vld [vmem:[#allocation2 + $0x318] sm:$0xff]
    %v222 = vld [vmem:[#allocation2 + $0x320] sm:$0xff]
    %v223 = vld [vmem:[#allocation2 + $0x328] sm:$0xff]
    %v224 = vld [vmem:[#allocation2 + $0x330] sm:$0xff]
    %v225 = vld [vmem:[#allocation2 + $0x338] sm:$0xff]
    %v226 = vld [vmem:[#allocation2 + $0x340] sm:$0xff]
    %v227 = vld [vmem:[#allocation2 + $0x348] sm:$0xff]
    %v228 = vld [vmem:[#allocation2 + $0x350] sm:$0xff]
    %v229 = vld [vmem:[#allocation2 + $0x358] sm:$0xff]
    %v230 = vld [vmem:[#allocation2 + $0x360] sm:$0xff]
    %v231 = vld [vmem:[#allocation2 + $0x368] sm:$0xff]
    %v232 = vld [vmem:[#allocation2 + $0x370] sm:$0xff]
    %v233 = vld [vmem:[#allocation2 + $0x378] sm:$0xff]
    %v234 = vld [vmem:[#allocation2 + $0x380] sm:$0xff]
    %v235 = vld [vmem:[#allocation2 + $0x388] sm:$0xff]
    %v236 = vld [vmem:[#allocation2 + $0x390] sm:$0xff]
    %v237 = vld [vmem:[#allocation2 + $0x398] sm:$0xff]
    %v238 = vld [vmem:[#allocation2 + $0x3a0] sm:$0xff]
    %v239 = vld [vmem:[#allocation2 + $0x3a8] sm:$0xff]
    %v240 = vld [vmem:[#allocation2 + $0x3b0] sm:$0xff]
    %s241 = scalar_lea.vmem %s3, 1
    %v242 = vld [vmem:[%s241] ss:$2 sm:$0xff]
    %v244 = vlaneseq
    %v245 = vshrl.u32 %v244, 7
    %v246 = vsub.s32 0, %v245
    %v247 = vrot.slane %v242, %v246
    %v248 = vlaneseq
    %v249 = vshrl.u32 %v248, 7
    %v250 = vsub.s32 1, %v249
    %v251 = vrot.slane %v242, %v250
    %v252 = vlaneseq
    %v253 = vshrl.u32 %v252, 7
    %v254 = vsub.s32 2, %v253
    %v255 = vrot.slane %v242, %v254
    %v256 = vlaneseq
    %v257 = vshrl.u32 %v256, 7
    %v258 = vsub.s32 3, %v257
    %v259 = vrot.slane %v242, %v258
    %v260 = vlaneseq
    %v261 = vshrl.u32 %v260, 7
    %v262 = vsub.s32 4, %v261
    %v263 = vrot.slane %v242, %v262
    %v264 = vlaneseq
    %v265 = vshrl.u32 %v264, 7
    %v266 = vsub.s32 5, %v265
    %v267 = vrot.slane %v242, %v266
    %v268 = vlaneseq
    %v269 = vshrl.u32 %v268, 7
    %v270 = vsub.s32 6, %v269
    %v271 = vrot.slane %v242, %v270
    %279 = vmatprep.subr.mxu0 %v130
    %280 = vmatpush1.msra.mxu0 %v129
    %281 = vmatprep.subr.mxu0 %v137
    %282 = vmatpush1.msra.mxu0 %v136
    %283 = vmatprep.subr.mxu0 %v144
    %284 = vmatpush1.msra.mxu0 %v143
    %285 = vmatprep.subr.mxu0 %v151
    %286 = vmatpush1.msra.mxu0 %v150
    %287 = vmatprep.subr.mxu0 %v158
    %288 = vmatpush1.msra.mxu0 %v157
    %289 = vmatprep.subr.mxu0 %v165
    %290 = vmatpush1.msra.mxu0 %v164
    %291 = vmatprep.subr.mxu0 %v172
    %292 = vmatpush1.msra.mxu0 %v171
    %293 = vmatprep.subr.mxu0 %v179
    %294 = vmatpush1.msra.mxu0 %v178
    %295 = vmatprep.subr.mxu0 %v186
    %296 = vmatpush1.msra.mxu0 %v185
    %297 = vmatprep.subr.mxu0 %v193
    %298 = vmatpush1.msra.mxu0 %v192
    %299 = vmatprep.subr.mxu0 %v200
    %300 = vmatpush1.msra.mxu0 %v199
    %301 = vmatprep.subr.mxu0 %v207
    %302 = vmatpush1.msra.mxu0 %v206
    %303 = vmatprep.subr.mxu0 %v214
    %304 = vmatpush1.msra.mxu0 %v213
    %305 = vmatprep.subr.mxu0 %v221
    %306 = vmatpush1.msra.mxu0 %v220
    %307 = vmatprep.subr.mxu0 %v228
    %308 = vmatpush1.msra.mxu0 %v227
    %309 = vmatprep.subr.mxu0 %v235
    %310 = vmatpush1.msra.mxu0 %v234
    %311 = vmatprep.subr.mxu0 0.0
    %312 = vmatpush1.msra.mxu0 0.0
    %313 = vmatprep.subr.mxu0 0.0
    %314 = vmatpush1.msra.mxu0 0.0
    %315 = vmatprep.subr.mxu0 0.0
    %316 = vmatpush1.msra.mxu0 0.0
    %317 = vmatprep.subr.mxu0 0.0
    %318 = vmatpush1.msra.mxu0 0.0
    %319 = vmatprep.subr.mxu0 0.0
    %320 = vmatpush1.msra.mxu0 0.0
    %321 = vmatprep.subr.mxu0 0.0
    %322 = vmatpush1.msra.mxu0 0.0
    %323 = vmatprep.subr.mxu0 0.0
    %324 = vmatpush1.msra.mxu0 0.0
    %325 = vmatprep.subr.mxu0 0.0
    %326 = vmatpush1.msra.mxu0 0.0
    %327 = vmatprep.subr.mxu0 0.0
    %328 = vmatpush1.msra.mxu0 0.0
    %329 = vmatprep.subr.mxu0 0.0
    %330 = vmatpush1.msra.mxu0 0.0
    %331 = vmatprep.subr.mxu0 0.0
    %332 = vmatpush1.msra.mxu0 0.0
    %333 = vmatprep.subr.mxu0 0.0
    %334 = vmatpush1.msra.mxu0 0.0
    %335 = vmatprep.subr.mxu0 0.0
    %336 = vmatpush1.msra.mxu0 0.0
    %337 = vmatprep.subr.mxu0 0.0
    %338 = vmatpush1.msra.mxu0 0.0
    %339 = vmatprep.subr.mxu0 0.0
    %340 = vmatpush1.msra.mxu0 0.0
    %341 = vmatprep.subr.mxu0 0.0
    %342 = vmatpush1.msra.mxu0 0.0
    %343 = vmatprep.mubr.f32.mxu0 0.0
    %344 = vmatmul.mubr.f32.gmra.mrb[0].mxu0 %v128
    %v345 = vpop.f32.mrb[0].mxu0
    %v346 = vadd.f32 %v247, %v345
    %v347 = vpop.f32.mrb[0].mxu0
    %v348 = vadd.f32 %v251, %v347
    %349 = vdwg.mxu0
    %350 = vmatprep.subr.mxu0 %v132
    %351 = vmatpush1.msra.mxu0 %v131
    %352 = vmatprep.subr.mxu0 %v139
    %353 = vmatpush1.msra.mxu0 %v138
    %354 = vmatprep.subr.mxu0 %v146
    %355 = vmatpush1.msra.mxu0 %v145
    %356 = vmatprep.subr.mxu0 %v153
    %357 = vmatpush1.msra.mxu0 %v152
    %358 = vmatprep.subr.mxu0 %v160
    %359 = vmatpush1.msra.mxu0 %v159
    %360 = vmatprep.subr.mxu0 %v167
    %361 = vmatpush1.msra.mxu0 %v166
    %362 = vmatprep.subr.mxu0 %v174
    %363 = vmatpush1.msra.mxu0 %v173
    %364 = vmatprep.subr.mxu0 %v181
    %365 = vmatpush1.msra.mxu0 %v180
    %366 = vmatprep.subr.mxu0 %v188
    %367 = vmatpush1.msra.mxu0 %v187
    %368 = vmatprep.subr.mxu0 %v195
    %369 = vmatpush1.msra.mxu0 %v194
    %370 = vmatprep.subr.mxu0 %v202
    %371 = vmatpush1.msra.mxu0 %v201
    %372 = vmatprep.subr.mxu0 %v209
    %373 = vmatpush1.msra.mxu0 %v208
    %374 = vmatprep.subr.mxu0 %v216
    %375 = vmatpush1.msra.mxu0 %v215
    %376 = vmatprep.subr.mxu0 %v223
    %377 = vmatpush1.msra.mxu0 %v222
    %378 = vmatprep.subr.mxu0 %v230
    %379 = vmatpush1.msra.mxu0 %v229
    %380 = vmatprep.subr.mxu0 %v237
    %381 = vmatpush1.msra.mxu0 %v236
    %382 = vmatprep.subr.mxu0 0.0
    %383 = vmatpush1.msra.mxu0 0.0
    %384 = vmatprep.subr.mxu0 0.0
    %385 = vmatpush1.msra.mxu0 0.0
    %386 = vmatprep.subr.mxu0 0.0
    %387 = vmatpush1.msra.mxu0 0.0
    %388 = vmatprep.subr.mxu0 0.0
    %389 = vmatpush1.msra.mxu0 0.0
    %390 = vmatprep.subr.mxu0 0.0
    %391 = vmatpush1.msra.mxu0 0.0
    %392 = vmatprep.subr.mxu0 0.0
    %393 = vmatpush1.msra.mxu0 0.0
    %394 = vmatprep.subr.mxu0 0.0
    %395 = vmatpush1.msra.mxu0 0.0
    %396 = vmatprep.subr.mxu0 0.0
    %397 = vmatpush1.msra.mxu0 0.0
    %398 = vmatprep.subr.mxu0 0.0
    %399 = vmatpush1.msra.mxu0 0.0
    %400 = vmatprep.subr.mxu0 0.0
    %401 = vmatpush1.msra.mxu0 0.0
    %402 = vmatprep.subr.mxu0 0.0
    %403 = vmatpush1.msra.mxu0 0.0
    %404 = vmatprep.subr.mxu0 0.0
    %405 = vmatpush1.msra.mxu0 0.0
    %406 = vmatprep.subr.mxu0 0.0
    %407 = vmatpush1.msra.mxu0 0.0
    %408 = vmatprep.subr.mxu0 0.0
    %409 = vmatpush1.msra.mxu0 0.0
    %410 = vmatprep.subr.mxu0 0.0
    %411 = vmatpush1.msra.mxu0 0.0
    %412 = vmatprep.subr.mxu0 0.0
    %413 = vmatpush1.msra.mxu0 0.0
    %414 = vmatprep.mubr.f32.mxu0 0.0
    %415 = vmatmul.mubr.f32.gmra.mrb[0].mxu0 %v128
    %v416 = vpop.f32.mrb[0].mxu0
    %v417 = vadd.f32 %v255, %v416
    %v418 = vpop.f32.mrb[0].mxu0
    %v419 = vadd.f32 %v259, %v418
    %420 = vdwg.mxu0
    %421 = vmatprep.subr.mxu0 %v134
    %422 = vmatpush1.msra.mxu0 %v133
    %423 = vmatprep.subr.mxu0 %v141
    %424 = vmatpush1.msra.mxu0 %v140
    %425 = vmatprep.subr.mxu0 %v148
    %426 = vmatpush1.msra.mxu0 %v147
    %427 = vmatprep.subr.mxu0 %v155
    %428 = vmatpush1.msra.mxu0 %v154
    %429 = vmatprep.subr.mxu0 %v162
    %430 = vmatpush1.msra.mxu0 %v161
    %431 = vmatprep.subr.mxu0 %v169
    %432 = vmatpush1.msra.mxu0 %v168
    %433 = vmatprep.subr.mxu0 %v176
    %434 = vmatpush1.msra.mxu0 %v175
    %435 = vmatprep.subr.mxu0 %v183
    %436 = vmatpush1.msra.mxu0 %v182
    %437 = vmatprep.subr.mxu0 %v190
    %438 = vmatpush1.msra.mxu0 %v189
    %439 = vmatprep.subr.mxu0 %v197
    %440 = vmatpush1.msra.mxu0 %v196
    %441 = vmatprep.subr.mxu0 %v204
    %442 = vmatpush1.msra.mxu0 %v203
    %443 = vmatprep.subr.mxu0 %v211
    %444 = vmatpush1.msra.mxu0 %v210
    %445 = vmatprep.subr.mxu0 %v218
    %446 = vmatpush1.msra.mxu0 %v217
    %447 = vmatprep.subr.mxu0 %v225
    %448 = vmatpush1.msra.mxu0 %v224
    %449 = vmatprep.subr.mxu0 %v232
    %450 = vmatpush1.msra.mxu0 %v231
    %451 = vmatprep.subr.mxu0 %v239
    %452 = vmatpush1.msra.mxu0 %v238
    %453 = vmatprep.subr.mxu0 0.0
    %454 = vmatpush1.msra.mxu0 0.0
    %455 = vmatprep.subr.mxu0 0.0
    %456 = vmatpush1.msra.mxu0 0.0
    %457 = vmatprep.subr.mxu0 0.0
    %458 = vmatpush1.msra.mxu0 0.0
    %459 = vmatprep.subr.mxu0 0.0
    %460 = vmatpush1.msra.mxu0 0.0
    %461 = vmatprep.subr.mxu0 0.0
    %462 = vmatpush1.msra.mxu0 0.0
    %463 = vmatprep.subr.mxu0 0.0
    %464 = vmatpush1.msra.mxu0 0.0
    %465 = vmatprep.subr.mxu0 0.0
    %466 = vmatpush1.msra.mxu0 0.0
    %467 = vmatprep.subr.mxu0 0.0
    %468 = vmatpush1.msra.mxu0 0.0
    %469 = vmatprep.subr.mxu0 0.0
    %470 = vmatpush1.msra.mxu0 0.0
    %471 = vmatprep.subr.mxu0 0.0
    %472 = vmatpush1.msra.mxu0 0.0
    %473 = vmatprep.subr.mxu0 0.0
    %474 = vmatpush1.msra.mxu0 0.0
    %475 = vmatprep.subr.mxu0 0.0
    %476 = vmatpush1.msra.mxu0 0.0
    %477 = vmatprep.subr.mxu0 0.0
    %478 = vmatpush1.msra.mxu0 0.0
    %479 = vmatprep.subr.mxu0 0.0
    %480 = vmatpush1.msra.mxu0 0.0
    %481 = vmatprep.subr.mxu0 0.0
    %482 = vmatpush1.msra.mxu0 0.0
    %483 = vmatprep.subr.mxu0 0.0
    %484 = vmatpush1.msra.mxu0 0.0
    %485 = vmatprep.mubr.f32.mxu0 0.0
    %486 = vmatmul.mubr.f32.gmra.mrb[0].mxu0 %v128
    %v487 = vpop.f32.mrb[0].mxu0
    %v488 = vadd.f32 %v263, %v487
    %v489 = vpop.f32.mrb[0].mxu0
    %v490 = vadd.f32 %v267, %v489
    %491 = vdwg.mxu0
    %492 = vmatprep.subr.mxu0 0.0
    %493 = vmatpush1.msra.mxu0 %v135
    %494 = vmatprep.subr.mxu0 0.0
    %495 = vmatpush1.msra.mxu0 %v142
    %496 = vmatprep.subr.mxu0 0.0
    %497 = vmatpush1.msra.mxu0 %v149
    %498 = vmatprep.subr.mxu0 0.0
    %499 = vmatpush1.msra.mxu0 %v156
    %500 = vmatprep.subr.mxu0 0.0
    %501 = vmatpush1.msra.mxu0 %v163
    %502 = vmatprep.subr.mxu0 0.0
    %503 = vmatpush1.msra.mxu0 %v170
    %504 = vmatprep.subr.mxu0 0.0
    %505 = vmatpush1.msra.mxu0 %v177
    %506 = vmatprep.subr.mxu0 0.0
    %507 = vmatpush1.msra.mxu0 %v184
    %508 = vmatprep.subr.mxu0 0.0
    %509 = vmatpush1.msra.mxu0 %v191
    %510 = vmatprep.subr.mxu0 0.0
    %511 = vmatpush1.msra.mxu0 %v198
    %512 = vmatprep.subr.mxu0 0.0
    %513 = vmatpush1.msra.mxu0 %v205
    %514 = vmatprep.subr.mxu0 0.0
    %515 = vmatpush1.msra.mxu0 %v212
    %516 = vmatprep.subr.mxu0 0.0
    %517 = vmatpush1.msra.mxu0 %v219
    %518 = vmatprep.subr.mxu0 0.0
    %519 = vmatpush1.msra.mxu0 %v226
    %520 = vmatprep.subr.mxu0 0.0
    %521 = vmatpush1.msra.mxu0 %v233
    %522 = vmatprep.subr.mxu0 0.0
    %523 = vmatpush1.msra.mxu0 %v240
    %524 = vmatprep.subr.mxu0 0.0
    %525 = vmatpush1.msra.mxu0 0.0
    %526 = vmatprep.subr.mxu0 0.0
    %527 = vmatpush1.msra.mxu0 0.0
    %528 = vmatprep.subr.mxu0 0.0
    %529 = vmatpush1.msra.mxu0 0.0
    %530 = vmatprep.subr.mxu0 0.0
    %531 = vmatpush1.msra.mxu0 0.0
    %532 = vmatprep.subr.mxu0 0.0
    %533 = vmatpush1.msra.mxu0 0.0
    %534 = vmatprep.subr.mxu0 0.0
    %535 = vmatpush1.msra.mxu0 0.0
    %536 = vmatprep.subr.mxu0 0.0
    %537 = vmatpush1.msra.mxu0 0.0
    %538 = vmatprep.subr.mxu0 0.0
    %539 = vmatpush1.msra.mxu0 0.0
    %540 = vmatprep.subr.mxu0 0.0
    %541 = vmatpush1.msra.mxu0 0.0
    %542 = vmatprep.subr.mxu0 0.0
    %543 = vmatpush1.msra.mxu0 0.0
    %544 = vmatprep.subr.mxu0 0.0
    %545 = vmatpush1.msra.mxu0 0.0
    %546 = vmatprep.subr.mxu0 0.0
    %547 = vmatpush1.msra.mxu0 0.0
    %548 = vmatprep.subr.mxu0 0.0
    %549 = vmatpush1.msra.mxu0 0.0
    %550 = vmatprep.subr.mxu0 0.0
    %551 = vmatpush1.msra.mxu0 0.0
    %552 = vmatprep.subr.mxu0 0.0
    %553 = vmatpush1.msra.mxu0 0.0
    %554 = vmatprep.subr.mxu0 0.0
    %555 = vmatpush1.msra.mxu0 0.0
    %556 = vmatprep.mubr.f32.mxu0 0.0
    %557 = vmatmul.mubr.f32.gmra.mrb[0].mxu0 %v128
    %v558 = vpop.f32.mrb[0].mxu0
    %v559 = vadd.f32 %v271, %v558
    %v560 = vpop.f32.mrb[0].mxu0
    %561 = vdwg.mxu0
    %v562 = vld [vmem:[%s0] sm:$0xff]
    %v563 = vld [vmem:[%s4] sm:$0xff]
    %v564 = vld [vmem:[%s4 + $0x8] sm:$0xff]
    %v565 = vld [vmem:[%s4 + $0x10] sm:$0xff]
    %v566 = vld [vmem:[%s4 + $0x18] sm:$0xff]
    %v567 = vld [vmem:[%s4 + $0x20] sm:$0xff]
    %v568 = vld [vmem:[%s4 + $0x28] sm:$0xff]
    %v569 = vld [vmem:[%s4 + $0x30] sm:$0xff]
    %v570 = vld [vmem:[%s4 + $0x38] sm:$0xff]
    %v571 = vld [vmem:[%s5] sm:$0xff]
    %v572 = vld [vmem:[%s5 + $0x8] sm:$0xff]
    %v573 = vld [vmem:[%s5 + $0x10] sm:$0xff]
    %v574 = vld [vmem:[%s5 + $0x18] sm:$0xff]
    %v575 = vld [vmem:[%s5 + $0x20] sm:$0xff]
    %v576 = vld [vmem:[%s5 + $0x28] sm:$0xff]
    %v577 = vld [vmem:[%s5 + $0x30] sm:$0xff]
    %v578 = vld [vmem:[%s5 + $0x38] sm:$0xff]
    %v579 = vld [vmem:[%s5 + $0x40] sm:$0xff]
    %v580 = vld [vmem:[%s5 + $0x48] sm:$0xff]
    %v581 = vld [vmem:[%s5 + $0x50] sm:$0xff]
    %v582 = vld [vmem:[%s5 + $0x58] sm:$0xff]
    %v583 = vld [vmem:[%s5 + $0x60] sm:$0xff]
    %v584 = vld [vmem:[%s5 + $0x68] sm:$0xff]
    %v585 = vld [vmem:[%s5 + $0x70] sm:$0xff]
    %v586 = vld [vmem:[%s5 + $0x78] sm:$0xff]
    %v587 = vld [vmem:[%s5 + $0x80] sm:$0xff]
    %v588 = vld [vmem:[%s5 + $0x88] sm:$0xff]
    %v589 = vld [vmem:[%s5 + $0x90] sm:$0xff]
    %v590 = vld [vmem:[%s5 + $0x98] sm:$0xff]
    %v591 = vld [vmem:[%s5 + $0xa0] sm:$0xff]
    %v592 = vld [vmem:[%s5 + $0xa8] sm:$0xff]
    %v593 = vld [vmem:[%s5 + $0xb0] sm:$0xff]
    %v594 = vld [vmem:[%s5 + $0xb8] sm:$0xff]
    %v595 = vld [vmem:[%s5 + $0xc0] sm:$0xff]
    %v596 = vld [vmem:[%s5 + $0xc8] sm:$0xff]
    %v597 = vld [vmem:[%s5 + $0xd0] sm:$0xff]
    %v598 = vld [vmem:[%s5 + $0xd8] sm:$0xff]
    %v599 = vld [vmem:[%s5 + $0xe0] sm:$0xff]
    %v600 = vld [vmem:[%s5 + $0xe8] sm:$0xff]
    %v601 = vld [vmem:[%s5 + $0xf0] sm:$0xff]
    %v602 = vld [vmem:[%s5 + $0xf8] sm:$0xff]
    %v603 = vld [vmem:[%s5 + $0x100] sm:$0xff]
    %v604 = vld [vmem:[%s5 + $0x108] sm:$0xff]
    %v605 = vld [vmem:[%s5 + $0x110] sm:$0xff]
    %v606 = vld [vmem:[%s5 + $0x118] sm:$0xff]
    %v607 = vld [vmem:[%s5 + $0x120] sm:$0xff]
    %v608 = vld [vmem:[%s5 + $0x128] sm:$0xff]
    %v609 = vld [vmem:[%s5 + $0x130] sm:$0xff]
    %v610 = vld [vmem:[%s5 + $0x138] sm:$0xff]
    %v611 = vld [vmem:[%s5 + $0x140] sm:$0xff]
    %v612 = vld [vmem:[%s5 + $0x148] sm:$0xff]
    %v613 = vld [vmem:[%s5 + $0x150] sm:$0xff]
    %v614 = vld [vmem:[%s5 + $0x158] sm:$0xff]
    %v615 = vld [vmem:[%s5 + $0x160] sm:$0xff]
    %v616 = vld [vmem:[%s5 + $0x168] sm:$0xff]
    %v617 = vld [vmem:[%s5 + $0x170] sm:$0xff]
    %v618 = vld [vmem:[%s5 + $0x178] sm:$0xff]
    %v619 = vld [vmem:[%s5 + $0x180] sm:$0xff]
    %v620 = vld [vmem:[%s5 + $0x188] sm:$0xff]
    %v621 = vld [vmem:[%s5 + $0x190] sm:$0xff]
    %v622 = vld [vmem:[%s5 + $0x198] sm:$0xff]
    %v623 = vld [vmem:[%s5 + $0x1a0] sm:$0xff]
    %v624 = vld [vmem:[%s5 + $0x1a8] sm:$0xff]
    %v625 = vld [vmem:[%s5 + $0x1b0] sm:$0xff]
    %v626 = vld [vmem:[%s5 + $0x1b8] sm:$0xff]
    %v627 = vld [vmem:[%s5 + $0x1c0] sm:$0xff]
    %v628 = vld [vmem:[%s5 + $0x1c8] sm:$0xff]
    %v629 = vld [vmem:[%s5 + $0x1d0] sm:$0xff]
    %v630 = vld [vmem:[%s5 + $0x1d8] sm:$0xff]
    %v631 = vld [vmem:[%s5 + $0x1e0] sm:$0xff]
    %v632 = vld [vmem:[%s5 + $0x1e8] sm:$0xff]
    %v633 = vld [vmem:[%s5 + $0x1f0] sm:$0xff]
    %v634 = vld [vmem:[%s5 + $0x1f8] sm:$0xff]
    %vm635 = vcmask 130048
    %v637 = vsel %vm635, %v562, 0
    %639 = vmatprep.subr.mxu0 %v564
    %640 = vmatpush1.msra.mxu0 %v563
    %641 = vmatprep.subr.mxu0 %v568
    %642 = vmatpush1.msra.mxu0 %v567
    %643 = vmatprep.subr.mxu0 0.0
    %644 = vmatpush1.msra.mxu0 0.0
    %645 = vmatprep.subr.mxu0 0.0
    %646 = vmatpush1.msra.mxu0 0.0
    %647 = vmatprep.subr.mxu0 0.0
    %648 = vmatpush1.msra.mxu0 0.0
    %649 = vmatprep.subr.mxu0 0.0
    %650 = vmatpush1.msra.mxu0 0.0
    %651 = vmatprep.subr.mxu0 0.0
    %652 = vmatpush1.msra.mxu0 0.0
    %653 = vmatprep.subr.mxu0 0.0
    %654 = vmatpush1.msra.mxu0 0.0
    %655 = vmatprep.subr.mxu0 0.0
    %656 = vmatpush1.msra.mxu0 0.0
    %657 = vmatprep.subr.mxu0 0.0
    %658 = vmatpush1.msra.mxu0 0.0
    %659 = vmatprep.subr.mxu0 0.0
    %660 = vmatpush1.msra.mxu0 0.0
    %661 = vmatprep.subr.mxu0 0.0
    %662 = vmatpush1.msra.mxu0 0.0
    %663 = vmatprep.subr.mxu0 0.0
    %664 = vmatpush1.msra.mxu0 0.0
    %665 = vmatprep.subr.mxu0 0.0
    %666 = vmatpush1.msra.mxu0 0.0
    %667 = vmatprep.subr.mxu0 0.0
    %668 = vmatpush1.msra.mxu0 0.0
    %669 = vmatprep.subr.mxu0 0.0
    %670 = vmatpush1.msra.mxu0 0.0
    %671 = vmatprep.subr.mxu0 0.0
    %672 = vmatpush1.msra.mxu0 0.0
    %673 = vmatprep.subr.mxu0 0.0
    %674 = vmatpush1.msra.mxu0 0.0
    %675 = vmatprep.subr.mxu0 0.0
    %676 = vmatpush1.msra.mxu0 0.0
    %677 = vmatprep.subr.mxu0 0.0
    %678 = vmatpush1.msra.mxu0 0.0
    %679 = vmatprep.subr.mxu0 0.0
    %680 = vmatpush1.msra.mxu0 0.0
    %681 = vmatprep.subr.mxu0 0.0
    %682 = vmatpush1.msra.mxu0 0.0
    %683 = vmatprep.subr.mxu0 0.0
    %684 = vmatpush1.msra.mxu0 0.0
    %685 = vmatprep.subr.mxu0 0.0
    %686 = vmatpush1.msra.mxu0 0.0
    %687 = vmatprep.subr.mxu0 0.0
    %688 = vmatpush1.msra.mxu0 0.0
    %689 = vmatprep.subr.mxu0 0.0
    %690 = vmatpush1.msra.mxu0 0.0
    %691 = vmatprep.subr.mxu0 0.0
    %692 = vmatpush1.msra.mxu0 0.0
    %693 = vmatprep.subr.mxu0 0.0
    %694 = vmatpush1.msra.mxu0 0.0
    %695 = vmatprep.subr.mxu0 0.0
    %696 = vmatpush1.msra.mxu0 0.0
    %697 = vmatprep.subr.mxu0 0.0
    %698 = vmatpush1.msra.mxu0 0.0
    %699 = vmatprep.subr.mxu0 0.0
    %700 = vmatpush1.msra.mxu0 0.0
    %701 = vmatprep.subr.mxu0 0.0
    %702 = vmatpush1.msra.mxu0 0.0
    %703 = vmatprep.mubr.f32.mxu0 0.0
    %704 = vmatmul.mubr.f32.gmra.mrb[0].mxu0 %v637
    %v705 = vpop.f32.mrb[0].mxu0
    %v706 = vadd.f32 0.0, %v705
    %v707 = vpop.f32.mrb[0].mxu0
    %v708 = vadd.f32 0.0, %v707
    %709 = vdwg.mxu0
    %710 = vmatprep.subr.mxu0 %v566
    %711 = vmatpush1.msra.mxu0 %v565
    %712 = vmatprep.subr.mxu0 %v570
    %713 = vmatpush1.msra.mxu0 %v569
    %714 = vmatprep.subr.mxu0 0.0
    %715 = vmatpush1.msra.mxu0 0.0
    %716 = vmatprep.subr.mxu0 0.0
    %717 = vmatpush1.msra.mxu0 0.0
    %718 = vmatprep.subr.mxu0 0.0
    %719 = vmatpush1.msra.mxu0 0.0
    %720 = vmatprep.subr.mxu0 0.0
    %721 = vmatpush1.msra.mxu0 0.0
    %722 = vmatprep.subr.mxu0 0.0
    %723 = vmatpush1.msra.mxu0 0.0
    %724 = vmatprep.subr.mxu0 0.0
    %725 = vmatpush1.msra.mxu0 0.0
    %726 = vmatprep.subr.mxu0 0.0
    %727 = vmatpush1.msra.mxu0 0.0
    %728 = vmatprep.subr.mxu0 0.0
    %729 = vmatpush1.msra.mxu0 0.0
    %730 = vmatprep.subr.mxu0 0.0
    %731 = vmatpush1.msra.mxu0 0.0
    %732 = vmatprep.subr.mxu0 0.0
    %733 = vmatpush1.msra.mxu0 0.0
    %734 = vmatprep.subr.mxu0 0.0
    %735 = vmatpush1.msra.mxu0 0.0
    %736 = vmatprep.subr.mxu0 0.0
    %737 = vmatpush1.msra.mxu0 0.0
    %738 = vmatprep.subr.mxu0 0.0
    %739 = vmatpush1.msra.mxu0 0.0
    %740 = vmatprep.subr.mxu0 0.0
    %741 = vmatpush1.msra.mxu0 0.0
    %742 = vmatprep.subr.mxu0 0.0
    %743 = vmatpush1.msra.mxu0 0.0
    %744 = vmatprep.subr.mxu0 0.0
    %745 = vmatpush1.msra.mxu0 0.0
    %746 = vmatprep.subr.mxu0 0.0
    %747 = vmatpush1.msra.mxu0 0.0
    %748 = vmatprep.subr.mxu0 0.0
    %749 = vmatpush1.msra.mxu0 0.0
    %750 = vmatprep.subr.mxu0 0.0
    %751 = vmatpush1.msra.mxu0 0.0
    %752 = vmatprep.subr.mxu0 0.0
    %753 = vmatpush1.msra.mxu0 0.0
    %754 = vmatprep.subr.mxu0 0.0
    %755 = vmatpush1.msra.mxu0 0.0
    %756 = vmatprep.subr.mxu0 0.0
    %757 = vmatpush1.msra.mxu0 0.0
    %758 = vmatprep.subr.mxu0 0.0
    %759 = vmatpush1.msra.mxu0 0.0
    %760 = vmatprep.subr.mxu0 0.0
    %761 = vmatpush1.msra.mxu0 0.0
    %762 = vmatprep.subr.mxu0 0.0
    %763 = vmatpush1.msra.mxu0 0.0
    %764 = vmatprep.subr.mxu0 0.0
    %765 = vmatpush1.msra.mxu0 0.0
    %766 = vmatprep.subr.mxu0 0.0
    %767 = vmatpush1.msra.mxu0 0.0
    %768 = vmatprep.subr.mxu0 0.0
    %769 = vmatpush1.msra.mxu0 0.0
    %770 = vmatprep.subr.mxu0 0.0
    %771 = vmatpush1.msra.mxu0 0.0
    %772 = vmatprep.subr.mxu0 0.0
    %773 = vmatpush1.msra.mxu0 0.0
    %774 = vmatprep.mubr.f32.mxu0 0.0
    %775 = vmatmul.mubr.f32.gmra.mrb[0].mxu0 %v637
    %v776 = vpop.f32.mrb[0].mxu0
    %v777 = vadd.f32 0.0, %v776
    %v778 = vpop.f32.mrb[0].mxu0
    %v779 = vadd.f32 0.0, %v778
    %780 = vdwg.mxu0
    %v781 = vmul.f32 %v706, %v346
    %v782 = vmul.f32 %v708, %v348
    %v783 = vmul.f32 %v777, %v417
    %v784 = vmul.f32 %v779, %v419
    %785 = vmatprep.subr.mxu0 0.0
    %786 = vmatpush1.msra.mxu0 %v571
    %787 = vmatprep.subr.mxu0 0.0
    %788 = vmatpush1.msra.mxu0 %v572
    %789 = vmatprep.subr.mxu0 0.0
    %790 = vmatpush1.msra.mxu0 %v573
    %791 = vmatprep.subr.mxu0 0.0
    %792 = vmatpush1.msra.mxu0 %v574
    %793 = vmatprep.subr.mxu0 0.0
    %794 = vmatpush1.msra.mxu0 %v575
    %795 = vmatprep.subr.mxu0 0.0
    %796 = vmatpush1.msra.mxu0 %v576
    %797 = vmatprep.subr.mxu0 0.0
    %798 = vmatpush1.msra.mxu0 %v577
    %799 = vmatprep.subr.mxu0 0.0
    %800 = vmatpush1.msra.mxu0 %v578
    %801 = vmatprep.subr.mxu0 0.0
    %802 = vmatpush1.msra.mxu0 %v579
    %803 = vmatprep.subr.mxu0 0.0
    %804 = vmatpush1.msra.mxu0 %v580
    %805 = vmatprep.subr.mxu0 0.0
    %806 = vmatpush1.msra.mxu0 %v581
    %807 = vmatprep.subr.mxu0 0.0
    %808 = vmatpush1.msra.mxu0 %v582
    %809 = vmatprep.subr.mxu0 0.0
    %810 = vmatpush1.msra.mxu0 %v583
    %811 = vmatprep.subr.mxu0 0.0
    %812 = vmatpush1.msra.mxu0 %v584
    %813 = vmatprep.subr.mxu0 0.0
    %814 = vmatpush1.msra.mxu0 %v585
    %815 = vmatprep.subr.mxu0 0.0
    %816 = vmatpush1.msra.mxu0 %v586
    %817 = vmatprep.subr.mxu0 0.0
    %818 = vmatpush1.msra.mxu0 %v587
    %819 = vmatprep.subr.mxu0 0.0
    %820 = vmatpush1.msra.mxu0 %v588
    %821 = vmatprep.subr.mxu0 0.0
    %822 = vmatpush1.msra.mxu0 %v589
    %823 = vmatprep.subr.mxu0 0.0
    %824 = vmatpush1.msra.mxu0 %v590
    %825 = vmatprep.subr.mxu0 0.0
    %826 = vmatpush1.msra.mxu0 %v591
    %827 = vmatprep.subr.mxu0 0.0
    %828 = vmatpush1.msra.mxu0 %v592
    %829 = vmatprep.subr.mxu0 0.0
    %830 = vmatpush1.msra.mxu0 %v593
    %831 = vmatprep.subr.mxu0 0.0
    %832 = vmatpush1.msra.mxu0 %v594
    %833 = vmatprep.subr.mxu0 0.0
    %834 = vmatpush1.msra.mxu0 %v595
    %835 = vmatprep.subr.mxu0 0.0
    %836 = vmatpush1.msra.mxu0 %v596
    %837 = vmatprep.subr.mxu0 0.0
    %838 = vmatpush1.msra.mxu0 %v597
    %839 = vmatprep.subr.mxu0 0.0
    %840 = vmatpush1.msra.mxu0 %v598
    %841 = vmatprep.subr.mxu0 0.0
    %842 = vmatpush1.msra.mxu0 %v599
    %843 = vmatprep.subr.mxu0 0.0
    %844 = vmatpush1.msra.mxu0 %v600
    %845 = vmatprep.subr.mxu0 0.0
    %846 = vmatpush1.msra.mxu0 %v601
    %847 = vmatprep.subr.mxu0 0.0
    %848 = vmatpush1.msra.mxu0 %v602
    %849 = vmatprep.mubr.f32.mxu0 %v782
    %850 = vmatmul.mubr.f32.gmra.mrb[0].mxu0 %v781
    %v851 = vpop.f32.mrb[0].mxu0
    %v852 = vadd.f32 %v559, %v851
    %v853 = vpop.f32.mrb[0].mxu0
    %854 = vdwg.mxu0
    %855 = vmatprep.subr.mxu0 0.0
    %856 = vmatpush1.msra.mxu0 %v603
    %857 = vmatprep.subr.mxu0 0.0
    %858 = vmatpush1.msra.mxu0 %v604
    %859 = vmatprep.subr.mxu0 0.0
    %860 = vmatpush1.msra.mxu0 %v605
    %861 = vmatprep.subr.mxu0 0.0
    %862 = vmatpush1.msra.mxu0 %v606
    %863 = vmatprep.subr.mxu0 0.0
    %864 = vmatpush1.msra.mxu0 %v607
    %865 = vmatprep.subr.mxu0 0.0
    %866 = vmatpush1.msra.mxu0 %v608
    %867 = vmatprep.subr.mxu0 0.0
    %868 = vmatpush1.msra.mxu0 %v609
    %869 = vmatprep.subr.mxu0 0.0
    %870 = vmatpush1.msra.mxu0 %v610
    %871 = vmatprep.subr.mxu0 0.0
    %872 = vmatpush1.msra.mxu0 %v611
    %873 = vmatprep.subr.mxu0 0.0
    %874 = vmatpush1.msra.mxu0 %v612
    %875 = vmatprep.subr.mxu0 0.0
    %876 = vmatpush1.msra.mxu0 %v613
    %877 = vmatprep.subr.mxu0 0.0
    %878 = vmatpush1.msra.mxu0 %v614
    %879 = vmatprep.subr.mxu0 0.0
    %880 = vmatpush1.msra.mxu0 %v615
    %881 = vmatprep.subr.mxu0 0.0
    %882 = vmatpush1.msra.mxu0 %v616
    %883 = vmatprep.subr.mxu0 0.0
    %884 = vmatpush1.msra.mxu0 %v617
    %885 = vmatprep.subr.mxu0 0.0
    %886 = vmatpush1.msra.mxu0 %v618
    %887 = vmatprep.subr.mxu0 0.0
    %888 = vmatpush1.msra.mxu0 %v619
    %889 = vmatprep.subr.mxu0 0.0
    %890 = vmatpush1.msra.mxu0 %v620
    %891 = vmatprep.subr.mxu0 0.0
    %892 = vmatpush1.msra.mxu0 %v621
    %893 = vmatprep.subr.mxu0 0.0
    %894 = vmatpush1.msra.mxu0 %v622
    %895 = vmatprep.subr.mxu0 0.0
    %896 = vmatpush1.msra.mxu0 %v623
    %897 = vmatprep.subr.mxu0 0.0
    %898 = vmatpush1.msra.mxu0 %v624
    %899 = vmatprep.subr.mxu0 0.0
    %900 = vmatpush1.msra.mxu0 %v625
    %901 = vmatprep.subr.mxu0 0.0
    %902 = vmatpush1.msra.mxu0 %v626
    %903 = vmatprep.subr.mxu0 0.0
    %904 = vmatpush1.msra.mxu0 %v627
    %905 = vmatprep.subr.mxu0 0.0
    %906 = vmatpush1.msra.mxu0 %v628
    %907 = vmatprep.subr.mxu0 0.0
    %908 = vmatpush1.msra.mxu0 %v629
    %909 = vmatprep.subr.mxu0 0.0
    %910 = vmatpush1.msra.mxu0 %v630
    %911 = vmatprep.subr.mxu0 0.0
    %912 = vmatpush1.msra.mxu0 %v631
    %913 = vmatprep.subr.mxu0 0.0
    %914 = vmatpush1.msra.mxu0 %v632
    %915 = vmatprep.subr.mxu0 0.0
    %916 = vmatpush1.msra.mxu0 %v633
    %917 = vmatprep.subr.mxu0 0.0
    %918 = vmatpush1.msra.mxu0 %v634
    %919 = vmatprep.mubr.f32.mxu0 %v784
    %920 = vmatmul.mubr.f32.gmra.mrb[0].mxu0 %v783
    %v921 = vpop.f32.mrb[0].mxu0
    %v922 = vadd.f32 %v852, %v921
    %v923 = vpop.f32.mrb[0].mxu0
    %924 = vdwg.mxu0
    %v925 = vmax.f32 %v922, 0.0
    %v926 = vld [vmem:[%s6] sm:$0xff]
    %v927 = vld [vmem:[%s6 + $0x8] sm:$0xff]
    %v928 = vld [vmem:[%s6 + $0x10] sm:$0xff]
    %v929 = vld [vmem:[%s6 + $0x18] sm:$0xff]
    %v930 = vld [vmem:[%s6 + $0x20] sm:$0xff]
    %v931 = vld [vmem:[%s6 + $0x28] sm:$0xff]
    %v932 = vld [vmem:[%s6 + $0x30] sm:$0xff]
    %v933 = vld [vmem:[%s6 + $0x38] sm:$0xff]
    %v934 = vld [vmem:[%s7] sm:$0xff]
    %v935 = vld [vmem:[%s7 + $0x8] sm:$0xff]
    %v936 = vld [vmem:[%s7 + $0x10] sm:$0xff]
    %v937 = vld [vmem:[%s7 + $0x18] sm:$0xff]
    %v938 = vld [vmem:[%s7 + $0x20] sm:$0xff]
    %v939 = vld [vmem:[%s7 + $0x28] sm:$0xff]
    %v940 = vld [vmem:[%s7 + $0x30] sm:$0xff]
    %v941 = vld [vmem:[%s7 + $0x38] sm:$0xff]
    %v942 = vld [vmem:[%s7 + $0x40] sm:$0xff]
    %v943 = vld [vmem:[%s7 + $0x48] sm:$0xff]
    %v944 = vld [vmem:[%s7 + $0x50] sm:$0xff]
    %v945 = vld [vmem:[%s7 + $0x58] sm:$0xff]
    %v946 = vld [vmem:[%s7 + $0x60] sm:$0xff]
    %v947 = vld [vmem:[%s7 + $0x68] sm:$0xff]
    %v948 = vld [vmem:[%s7 + $0x70] sm:$0xff]
    %v949 = vld [vmem:[%s7 + $0x78] sm:$0xff]
    %v950 = vld [vmem:[%s7 + $0x80] sm:$0xff]
    %v951 = vld [vmem:[%s7 + $0x88] sm:$0xff]
    %v952 = vld [vmem:[%s7 + $0x90] sm:$0xff]
    %v953 = vld [vmem:[%s7 + $0x98] sm:$0xff]
    %v954 = vld [vmem:[%s7 + $0xa0] sm:$0xff]
    %v955 = vld [vmem:[%s7 + $0xa8] sm:$0xff]
    %v956 = vld [vmem:[%s7 + $0xb0] sm:$0xff]
    %v957 = vld [vmem:[%s7 + $0xb8] sm:$0xff]
    %v958 = vld [vmem:[%s7 + $0xc0] sm:$0xff]
    %v959 = vld [vmem:[%s7 + $0xc8] sm:$0xff]
    %v960 = vld [vmem:[%s7 + $0xd0] sm:$0xff]
    %v961 = vld [vmem:[%s7 + $0xd8] sm:$0xff]
    %v962 = vld [vmem:[%s7 + $0xe0] sm:$0xff]
    %v963 = vld [vmem:[%s7 + $0xe8] sm:$0xff]
    %v964 = vld [vmem:[%s7 + $0xf0] sm:$0xff]
    %v965 = vld [vmem:[%s7 + $0xf8] sm:$0xff]
    %vm966 = vcmask 261120
    %v968 = vsel %vm966, %v925, 0
    %970 = vmatprep.subr.mxu0 %v927
    %971 = vmatpush1.msra.mxu0 %v926
    %972 = vmatprep.subr.mxu0 %v929
    %973 = vmatpush1.msra.mxu0 %v928
    %974 = vmatprep.subr.mxu0 %v931
    %975 = vmatpush1.msra.mxu0 %v930
    %976 = vmatprep.subr.mxu0 %v933
    %977 = vmatpush1.msra.mxu0 %v932
    %978 = vmatprep.subr.mxu0 0.0
    %979 = vmatpush1.msra.mxu0 0.0
    %980 = vmatprep.subr.mxu0 0.0
    %981 = vmatpush1.msra.mxu0 0.0
    %982 = vmatprep.subr.mxu0 0.0
    %983 = vmatpush1.msra.mxu0 0.0
    %984 = vmatprep.subr.mxu0 0.0
    %985 = vmatpush1.msra.mxu0 0.0
    %986 = vmatprep.subr.mxu0 0.0
    %987 = vmatpush1.msra.mxu0 0.0
    %988 = vmatprep.subr.mxu0 0.0
    %989 = vmatpush1.msra.mxu0 0.0
    %990 = vmatprep.subr.mxu0 0.0
    %991 = vmatpush1.msra.mxu0 0.0
    %992 = vmatprep.subr.mxu0 0.0
    %993 = vmatpush1.msra.mxu0 0.0
    %994 = vmatprep.subr.mxu0 0.0
    %995 = vmatpush1.msra.mxu0 0.0
    %996 = vmatprep.subr.mxu0 0.0
    %997 = vmatpush1.msra.mxu0 0.0
    %998 = vmatprep.subr.mxu0 0.0
    %999 = vmatpush1.msra.mxu0 0.0
    %1000 = vmatprep.subr.mxu0 0.0
    %1001 = vmatpush1.msra.mxu0 0.0
    %1002 = vmatprep.subr.mxu0 0.0
    %1003 = vmatpush1.msra.mxu0 0.0
    %1004 = vmatprep.subr.mxu0 0.0
    %1005 = vmatpush1.msra.mxu0 0.0
    %1006 = vmatprep.subr.mxu0 0.0
    %1007 = vmatpush1.msra.mxu0 0.0
    %1008 = vmatprep.subr.mxu0 0.0
    %1009 = vmatpush1.msra.mxu0 0.0
    %1010 = vmatprep.subr.mxu0 0.0
    %1011 = vmatpush1.msra.mxu0 0.0
    %1012 = vmatprep.subr.mxu0 0.0
    %1013 = vmatpush1.msra.mxu0 0.0
    %1014 = vmatprep.subr.mxu0 0.0
    %1015 = vmatpush1.msra.mxu0 0.0
    %1016 = vmatprep.subr.mxu0 0.0
    %1017 = vmatpush1.msra.mxu0 0.0
    %1018 = vmatprep.subr.mxu0 0.0
    %1019 = vmatpush1.msra.mxu0 0.0
    %1020 = vmatprep.subr.mxu0 0.0
    %1021 = vmatpush1.msra.mxu0 0.0
    %1022 = vmatprep.subr.mxu0 0.0
    %1023 = vmatpush1.msra.mxu0 0.0
    %1024 = vmatprep.subr.mxu0 0.0
    %1025 = vmatpush1.msra.mxu0 0.0
    %1026 = vmatprep.subr.mxu0 0.0
    %1027 = vmatpush1.msra.mxu0 0.0
    %1028 = vmatprep.subr.mxu0 0.0
    %1029 = vmatpush1.msra.mxu0 0.0
    %1030 = vmatprep.subr.mxu0 0.0
    %1031 = vmatpush1.msra.mxu0 0.0
    %1032 = vmatprep.subr.mxu0 0.0
    %1033 = vmatpush1.msra.mxu0 0.0
    %1034 = vmatprep.mubr.f32.mxu0 0.0
    %1035 = vmatmul.mubr.f32.gmra.mrb[0].mxu0 %v968
    %v1036 = vpop.f32.mrb[0].mxu0
    %v1037 = vadd.f32 0.0, %v1036
    %v1038 = vpop.f32.mrb[0].mxu0
    %v1039 = vadd.f32 0.0, %v1038
    %1040 = vdwg.mxu0
    %v1041 = vmul.f32 %v1037, %v488
    %v1042 = vmul.f32 %v1039, %v490
    %v1043 = vld [vmem:[%s8] sm:$0xff]
    %v1044 = vld [vmem:[%s8 + $0x8] sm:$0xff]
    %v1045 = vld [vmem:[%s8 + $0x10] sm:$0xff]
    %v1046 = vld [vmem:[%s8 + $0x18] sm:$0xff]
    %v1047 = vld [vmem:[%s8 + $0x20] sm:$0xff]
    %v1048 = vld [vmem:[%s8 + $0x28] sm:$0xff]
    %v1049 = vld [vmem:[%s8 + $0x30] sm:$0xff]
    %v1050 = vld [vmem:[%s8 + $0x38] sm:$0xff]
    %v1051 = vld [vmem:[%s8 + $0x40] sm:$0xff]
    %v1052 = vld [vmem:[%s8 + $0x48] sm:$0xff]
    %v1053 = vld [vmem:[%s8 + $0x50] sm:$0xff]
    %v1054 = vld [vmem:[%s8 + $0x58] sm:$0xff]
    %v1055 = vld [vmem:[%s8 + $0x60] sm:$0xff]
    %v1056 = vld [vmem:[%s8 + $0x68] sm:$0xff]
    %v1057 = vld [vmem:[%s8 + $0x70] sm:$0xff]
    %v1058 = vld [vmem:[%s8 + $0x78] sm:$0xff]
    %1059 = vmatprep.subr.mxu0 0.0
    %1060 = vmatpush1.msra.mxu0 %v1043
    %1061 = vmatprep.subr.mxu0 0.0
    %1062 = vmatpush1.msra.mxu0 %v1044
    %1063 = vmatprep.subr.mxu0 0.0
    %1064 = vmatpush1.msra.mxu0 %v1045
    %1065 = vmatprep.subr.mxu0 0.0
    %1066 = vmatpush1.msra.mxu0 %v1046
    %1067 = vmatprep.subr.mxu0 0.0
    %1068 = vmatpush1.msra.mxu0 %v1047
    %1069 = vmatprep.subr.mxu0 0.0
    %1070 = vmatpush1.msra.mxu0 %v1048
    %1071 = vmatprep.subr.mxu0 0.0
    %1072 = vmatpush1.msra.mxu0 %v1049
    %1073 = vmatprep.subr.mxu0 0.0
    %1074 = vmatpush1.msra.mxu0 %v1050
    %1075 = vmatprep.subr.mxu0 0.0
    %1076 = vmatpush1.msra.mxu0 %v1051
    %1077 = vmatprep.subr.mxu0 0.0
    %1078 = vmatpush1.msra.mxu0 %v1052
    %1079 = vmatprep.subr.mxu0 0.0
    %1080 = vmatpush1.msra.mxu0 %v1053
    %1081 = vmatprep.subr.mxu0 0.0
    %1082 = vmatpush1.msra.mxu0 %v1054
    %1083 = vmatprep.subr.mxu0 0.0
    %1084 = vmatpush1.msra.mxu0 %v1055
    %1085 = vmatprep.subr.mxu0 0.0
    %1086 = vmatpush1.msra.mxu0 %v1056
    %1087 = vmatprep.subr.mxu0 0.0
    %1088 = vmatpush1.msra.mxu0 %v1057
    %1089 = vmatprep.subr.mxu0 0.0
    %1090 = vmatpush1.msra.mxu0 %v1058
    %1091 = vmatprep.subr.mxu0 0.0
    %1092 = vmatpush1.msra.mxu0 0.0
    %1093 = vmatprep.subr.mxu0 0.0
    %1094 = vmatpush1.msra.mxu0 0.0
    %1095 = vmatprep.subr.mxu0 0.0
    %1096 = vmatpush1.msra.mxu0 0.0
    %1097 = vmatprep.subr.mxu0 0.0
    %1098 = vmatpush1.msra.mxu0 0.0
    %1099 = vmatprep.subr.mxu0 0.0
    %1100 = vmatpush1.msra.mxu0 0.0
    %1101 = vmatprep.subr.mxu0 0.0
    %1102 = vmatpush1.msra.mxu0 0.0
    %1103 = vmatprep.subr.mxu0 0.0
    %1104 = vmatpush1.msra.mxu0 0.0
    %1105 = vmatprep.subr.mxu0 0.0
    %1106 = vmatpush1.msra.mxu0 0.0
    %1107 = vmatprep.subr.mxu0 0.0
    %1108 = vmatpush1.msra.mxu0 0.0
    %1109 = vmatprep.subr.mxu0 0.0
    %1110 = vmatpush1.msra.mxu0 0.0
    %1111 = vmatprep.subr.mxu0 0.0
    %1112 = vmatpush1.msra.mxu0 0.0
    %1113 = vmatprep.subr.mxu0 0.0
    %1114 = vmatpush1.msra.mxu0 0.0
    %1115 = vmatprep.subr.mxu0 0.0
    %1116 = vmatpush1.msra.mxu0 0.0
    %1117 = vmatprep.subr.mxu0 0.0
    %1118 = vmatpush1.msra.mxu0 0.0
    %1119 = vmatprep.subr.mxu0 0.0
    %1120 = vmatpush1.msra.mxu0 0.0
    %1121 = vmatprep.subr.mxu0 0.0
    %1122 = vmatpush1.msra.mxu0 0.0
    %1123 = vmatprep.mubr.f32.mxu0 0.0
    %1124 = vmatmul.mubr.f32.gmra.mrb[0].mxu0 %v559
    %v1125 = vpop.f32.mrb[0].mxu0
    %v1126 = vadd.f32 0.0, %v1125
    %v1127 = vpop.f32.mrb[0].mxu0
    %1128 = vdwg.mxu0
    %1129 = vmatprep.subr.mxu0 0.0
    %1130 = vmatpush1.msra.mxu0 %v934
    %1131 = vmatprep.subr.mxu0 0.0
    %1132 = vmatpush1.msra.mxu0 %v935
    %1133 = vmatprep.subr.mxu0 0.0
    %1134 = vmatpush1.msra.mxu0 %v936
    %1135 = vmatprep.subr.mxu0 0.0
    %1136 = vmatpush1.msra.mxu0 %v937
    %1137 = vmatprep.subr.mxu0 0.0
    %1138 = vmatpush1.msra.mxu0 %v938
    %1139 = vmatprep.subr.mxu0 0.0
    %1140 = vmatpush1.msra.mxu0 %v939
    %1141 = vmatprep.subr.mxu0 0.0
    %1142 = vmatpush1.msra.mxu0 %v940
    %1143 = vmatprep.subr.mxu0 0.0
    %1144 = vmatpush1.msra.mxu0 %v941
    %1145 = vmatprep.subr.mxu0 0.0
    %1146 = vmatpush1.msra.mxu0 %v942
    %1147 = vmatprep.subr.mxu0 0.0
    %1148 = vmatpush1.msra.mxu0 %v943
    %1149 = vmatprep.subr.mxu0 0.0
    %1150 = vmatpush1.msra.mxu0 %v944
    %1151 = vmatprep.subr.mxu0 0.0
    %1152 = vmatpush1.msra.mxu0 %v945
    %1153 = vmatprep.subr.mxu0 0.0
    %1154 = vmatpush1.msra.mxu0 %v946
    %1155 = vmatprep.subr.mxu0 0.0
    %1156 = vmatpush1.msra.mxu0 %v947
    %1157 = vmatprep.subr.mxu0 0.0
    %1158 = vmatpush1.msra.mxu0 %v948
    %1159 = vmatprep.subr.mxu0 0.0
    %1160 = vmatpush1.msra.mxu0 %v949
    %1161 = vmatprep.subr.mxu0 0.0
    %1162 = vmatpush1.msra.mxu0 %v950
    %1163 = vmatprep.subr.mxu0 0.0
    %1164 = vmatpush1.msra.mxu0 %v951
    %1165 = vmatprep.subr.mxu0 0.0
    %1166 = vmatpush1.msra.mxu0 %v952
    %1167 = vmatprep.subr.mxu0 0.0
    %1168 = vmatpush1.msra.mxu0 %v953
    %1169 = vmatprep.subr.mxu0 0.0
    %1170 = vmatpush1.msra.mxu0 %v954
    %1171 = vmatprep.subr.mxu0 0.0
    %1172 = vmatpush1.msra.mxu0 %v955
    %1173 = vmatprep.subr.mxu0 0.0
    %1174 = vmatpush1.msra.mxu0 %v956
    %1175 = vmatprep.subr.mxu0 0.0
    %1176 = vmatpush1.msra.mxu0 %v957
    %1177 = vmatprep.subr.mxu0 0.0
    %1178 = vmatpush1.msra.mxu0 %v958
    %1179 = vmatprep.subr.mxu0 0.0
    %1180 = vmatpush1.msra.mxu0 %v959
    %1181 = vmatprep.subr.mxu0 0.0
    %1182 = vmatpush1.msra.mxu0 %v960
    %1183 = vmatprep.subr.mxu0 0.0
    %1184 = vmatpush1.msra.mxu0 %v961
    %1185 = vmatprep.subr.mxu0 0.0
    %1186 = vmatpush1.msra.mxu0 %v962
    %1187 = vmatprep.subr.mxu0 0.0
    %1188 = vmatpush1.msra.mxu0 %v963
    %1189 = vmatprep.subr.mxu0 0.0
    %1190 = vmatpush1.msra.mxu0 %v964
    %1191 = vmatprep.subr.mxu0 0.0
    %1192 = vmatpush1.msra.mxu0 %v965
    %1193 = vmatprep.mubr.f32.mxu0 %v1042
    %1194 = vmatmul.mubr.f32.gmra.mrb[0].mxu0 %v1041
    %v1195 = vpop.f32.mrb[0].mxu0
    %v1196 = vadd.f32 %v1126, %v1195
    %v1197 = vpop.f32.mrb[0].mxu0
    %1198 = vdwg.mxu0
    %v1199 = vmax.f32 %v1196, 0.0
    %1200 = vst [vmem:[#allocation5] sm:$0xff] %v1199
    // Predicated region
    $region42: #{tpu_custom_call.1} parent=1 // pred_check
      _
    $region43: #{tpu_custom_call.1} parent=1 // pred_check_branch
      %1202 = sbr.rel (0) target = $region45
    $region44: #{tpu_custom_call.1} parent=1 // pred_region
      %s1204 = ssub.s32 128, 128
      %1205 = vsyncadd [#allocation4], %s1204
      %s1207 = sshll.u32 [#allocation5], 4
      %s1208 = int_to_ptr.vmem [resolvable:$true] %s1207
      %1210 = dma.vmem_to_hbm [thread:$0]  %s1208, 128, %s9, [#allocation4]
    $region45: #{tpu_custom_call.1} parent=1 // pred_fallthru
      _
    // Predicated region
    $region46: #{tpu_custom_call.1} parent=1 // pred_check
      _
    $region47: #{tpu_custom_call.1} parent=1 // pred_check_branch
      %1212 = sbr.rel (0) target = $region49
    $region48: #{tpu_custom_call.1} parent=1 // pred_region
      %1213 = dma.done [#allocation4], 128
    $region49: #{tpu_custom_call.1} parent=1 // pred_fallthru
      _
    %1214 = vsyncpa [#allocation3], 1
    %1215 = vsyncpa [#allocation4], 1

</llo_original>
